<compile_context>
chip_gen: v7x
topology: tpu7x:2x2x1
jax: 0.10.0
libtpu: 0.0.40
codegen_flags: <defaults>
</compile_context>

<pallas_src>
import jax
import jax.numpy as jnp
from jax.experimental import pallas as pl
from jax.experimental.pallas import tpu as pltpu


def _round_up(x, m):
    return ((x + m - 1) // m) * m


_DEFAULT_VMEM_CAPACITY = 128 * 1024 * 1024


def _vmem_limit_bytes():
    """Generation-aware VMEM budget: physical capacity minus ~25% headroom."""
    cap = _DEFAULT_VMEM_CAPACITY
    try:
        info = pltpu.get_tpu_info()
        cap = int(getattr(info, "vmem_capacity_bytes", cap) or cap)
    except Exception:
        pass  # fall back to a conservative default if hardware query is unavailable
    return (cap * 3) // 4


def _trunk(x, w1_ref, b1_ref, w2_ref, b2_ref, w3_ref, b3_ref, w4_ref, b4_ref):
    """Encoder trunk + projection head; returns head_feature in f32 (MXU accumulate)."""
    bf16 = jnp.bfloat16
    h = jnp.dot(x, w1_ref[...], preferred_element_type=jnp.float32) + b1_ref[...]
    h = jnp.maximum(h, 0.0).astype(bf16)
    emb = jnp.dot(h, w2_ref[...], preferred_element_type=jnp.float32) + b2_ref[...]
    h2 = jnp.dot(emb.astype(bf16), w3_ref[...],
                 preferred_element_type=jnp.float32) + b3_ref[...]
    h2 = jnp.maximum(h2, 0.0).astype(bf16)
    head = jnp.dot(h2, w4_ref[...], preferred_element_type=jnp.float32) + b4_ref[...]
    return head


def _resident_kernel(x_ref, w1, b1, w2, b2, w3, b3, w4, b4, wp_ref,
                     head_ref, proto_ref):
    head = _trunk(x_ref[...], w1, b1, w2, b2, w3, b3, w4, b4)
    head_bf = head.astype(jnp.bfloat16)
    proto = jnp.dot(head_bf, wp_ref[...], preferred_element_type=jnp.float32)
    if head_ref.dtype == jnp.bfloat16:
        head_ref[...] = head_bf            # reuse the cast already needed for the matmul
    else:
        head_ref[...] = head.astype(head_ref.dtype)
    proto_ref[...] = proto.astype(proto_ref.dtype)


def _stream_proto_kernel(x_ref, w1, b1, w2, b2, w3, b3, w4, b4, wp_ref,
                         head_ref, proto_ref, head_bf_scratch):
    # Trunk computed once per batch tile (at j == 0); prototype columns streamed over j.
    @pl.when(pl.program_id(1) == 0)
    def _():
        head = _trunk(x_ref[...], w1, b1, w2, b2, w3, b3, w4, b4)
        head_bf = head.astype(jnp.bfloat16)
        head_bf_scratch[...] = head_bf
        if head_ref.dtype == jnp.bfloat16:
            head_ref[...] = head_bf
        else:
            head_ref[...] = head.astype(head_ref.dtype)

    proto = jnp.dot(head_bf_scratch[...], wp_ref[...],
                    preferred_element_type=jnp.float32)
    proto_ref[...] = proto.astype(proto_ref.dtype)


def simclr_forward(x, params, *, tile_b=256, tile_p=1024, out_dtype=jnp.bfloat16,
                   force_stream_proto=False):
    """Fused SimCLR forward. Returns (head_feature, prototype), trimmed to true shapes."""
    w1, b1, w2, b2, w3, b3, w4, b4, wp = params
    B, D = x.shape
    H = w1.shape[1]
    P = wp.shape[1]

    # Feature dims padded to 128 lanes (zero padding is exact: ReLU(0)=0 and zero weight
    # rows/cols contribute nothing).  Batch padded only to the bf16 sublane pack (16);
    # a ragged last batch block is handled by the cdiv grid, not by over-padding.
    Dp = _round_up(D, 128)
    Hp = _round_up(H, 128)
    Pp = _round_up(P, 128)
    Bp = _round_up(B, 16)

    tb = max(16, min(_round_up(tile_b, 16), Bp))
    # Guarantee >=2 grid steps along the (parallel) batch axis when the batch allows it,
    # so both v7x TensorCores get work; 256-row floor keeps the MXU M dimension full.
    while tb > 256 and pl.cdiv(Bp, tb) < 2:
        tb //= 2
    grid_b = pl.cdiv(Bp, tb)

    vmem_limit = _vmem_limit_bytes()
    bf16 = jnp.bfloat16

    def pad2(a, rows, cols, dtype):
        out = jnp.zeros((rows, cols), dtype)
        return out.at[:a.shape[0], :a.shape[1]].set(a.astype(dtype))

    xp = pad2(x, Bp, Dp, bf16)
    w1p = pad2(w1, Dp, Hp, bf16); b1p = pad2(b1, 1, Hp, jnp.float32)
    w2p = pad2(w2, Hp, Hp, bf16); b2p = pad2(b2, 1, Hp, jnp.float32)
    w3p = pad2(w3, Hp, Hp, bf16); b3p = pad2(b3, 1, Hp, jnp.float32)
    w4p = pad2(w4, Hp, Hp, bf16); b4p = pad2(b4, 1, Hp, jnp.float32)
    wpp = pad2(wp, Hp, Pp, bf16)

    # bf16 weight footprint if everything stays VMEM-resident (single-buffered).
    resident_weight_bytes = 2 * (Dp * Hp + 3 * Hp * Hp + Hp * Pp) + 4 * 4 * Hp
    stream_proto = force_stream_proto or resident_weight_bytes > (vmem_limit * 3) // 5

    out_isz = jnp.dtype(out_dtype).itemsize
    flops = 2 * Bp * (Dp * Hp + 3 * Hp * Hp + Hp * Pp)
    bytes_accessed = (xp.size * 2 + resident_weight_bytes
                      + Bp * Hp * out_isz + Bp * Pp * out_isz)
    cost = pl.CostEstimate(flops=flops, transcendentals=0,
                           bytes_accessed=bytes_accessed)

    def run(single_buffer_weights):
        if single_buffer_weights:
            # Constant index_map => no re-DMA across grid steps; Buffered(1) drops the
            # useless second buffer, halving the resident weights' VMEM footprint.
            def wspec(shape):
                return pl.BlockSpec(shape, lambda *_: (0, 0),
                                    pipeline_mode=pl.Buffered(1))
        else:
            def wspec(shape):
                return pl.BlockSpec(shape, lambda *_: (0, 0))

        weight_specs = [
            wspec((Dp, Hp)), wspec((1, Hp)),
            wspec((Hp, Hp)), wspec((1, Hp)),
            wspec((Hp, Hp)), wspec((1, Hp)),
            wspec((Hp, Hp)), wspec((1, Hp)),
        ]

        if not stream_proto:
            grid = (grid_b,)
            in_specs = ([pl.BlockSpec((tb, Dp), lambda i: (i, 0))]
                        + weight_specs + [wspec((Hp, Pp))])
            out_specs = (pl.BlockSpec((tb, Hp), lambda i: (i, 0)),
                         pl.BlockSpec((tb, Pp), lambda i: (i, 0)))
            kernel = _resident_kernel
            scratch_shapes = ()
            dims = ("parallel",)
        else:
            tp = max(128, min(_round_up(tile_p, 128), Pp))
            grid = (grid_b, pl.cdiv(Pp, tp))
            in_specs = ([pl.BlockSpec((tb, Dp), lambda i, j: (i, 0))]
                        + weight_specs
                        + [pl.BlockSpec((Hp, tp), lambda i, j: (0, j))])  # stream wp
            out_specs = (pl.BlockSpec((tb, Hp), lambda i, j: (i, 0)),
                         pl.BlockSpec((tb, tp), lambda i, j: (i, j)))
            kernel = _stream_proto_kernel
            scratch_shapes = (pltpu.VMEM((tb, Hp), bf16),)
            dims = ("parallel", "arbitrary")

        call = pl.pallas_call(
            kernel,
            grid=grid,
            out_shape=(jax.ShapeDtypeStruct((Bp, Hp), out_dtype),
                       jax.ShapeDtypeStruct((Bp, Pp), out_dtype)),
            in_specs=in_specs,
            out_specs=out_specs,
            scratch_shapes=scratch_shapes,
            compiler_params=pltpu.CompilerParams(
                dimension_semantics=dims,
                vmem_limit_bytes=vmem_limit),
            cost_estimate=cost,
        )
        return call(xp, w1p, b1p, w2p, b2p, w3p, b3p, w4p, b4p, wpp)

    try:
        head, proto = run(single_buffer_weights=True)
    except Exception:
        # Fallback for Pallas builds without pipeline_mode=Buffered(1) support:
        # identical math, just default double-buffered weight specs.
        head, proto = run(single_buffer_weights=False)

    return head[:B, :H], proto[:B, :P]


def init_params(key, input_dim, hidden_dim, nmb_prototypes):
    ks = jax.random.split(key, 9)
    scale = 0.1

    def lin(k, din, dout):
        return scale * jax.random.normal(k, (din, dout), dtype=jnp.float32)

    w1 = lin(ks[0], input_dim, hidden_dim)
    b1 = scale * jax.random.normal(ks[1], (1, hidden_dim), dtype=jnp.float32)
    w2 = lin(ks[2], hidden_dim, hidden_dim)
    b2 = scale * jax.random.normal(ks[3], (1, hidden_dim), dtype=jnp.float32)
    w3 = lin(ks[4], hidden_dim, hidden_dim)
    b3 = scale * jax.random.normal(ks[5], (1, hidden_dim), dtype=jnp.float32)
    w4 = lin(ks[6], hidden_dim, hidden_dim)
    b4 = scale * jax.random.normal(ks[7], (1, hidden_dim), dtype=jnp.float32)
    wp = lin(ks[8], hidden_dim, nmb_prototypes)
    return (w1, b1, w2, b2, w3, b3, w4, b4, wp)


def reference_forward(x, params):
    """Pure-JAX reference with the same mixed precision (bf16 operands, f32 accum)."""
    w1, b1, w2, b2, w3, b3, w4, b4, wp = params
    bf16 = jnp.bfloat16

    def mm(a, b):
        return jnp.dot(a.astype(bf16), b.astype(bf16),
                       preferred_element_type=jnp.float32)

    h = jnp.maximum(mm(x, w1) + b1, 0.0)
    emb = mm(h, w2) + b2
    h2 = jnp.maximum(mm(emb, w3) + b3, 0.0)
    head = mm(h2, w4) + b4
    proto = mm(head, wp)
    return head, proto


if __name__ == "__main__":
    # Small shapes consistent with the module's forward (tabular input).
    batch = 8
    input_dim = 16
    hidden_dim = 32
    nmb_prototypes = 16

    key = jax.random.PRNGKey(0)
    kx, kp = jax.random.split(key)
    x = jax.random.normal(kx, (batch, input_dim), dtype=jnp.float32)
    params = init_params(kp, input_dim, hidden_dim, nmb_prototypes)

    head_ref, proto_ref = reference_forward(x, params)

    # Default path: all weights (including prototypes) VMEM-resident, single-buffered.
    head, proto = simclr_forward(x, params)
    head = jax.block_until_ready(head)
    proto = jax.block_until_ready(proto)
    assert head.shape == (batch, hidden_dim)
    assert proto.shape == (batch, nmb_prototypes)
    assert jnp.allclose(head.astype(jnp.float32), head_ref, atol=2e-2, rtol=2e-2)
    assert jnp.allclose(proto.astype(jnp.float32), proto_ref, atol=2e-2, rtol=2e-2)

    # Large-model fallback path (streamed prototype columns) exercised at small shapes
    # so it is known to compile/run as well.
    head_s, proto_s = simclr_forward(x, params, force_stream_proto=True)
    head_s = jax.block_until_ready(head_s)
    proto_s = jax.block_until_ready(proto_s)
    assert jnp.allclose(head_s.astype(jnp.float32), head_ref, atol=2e-2, rtol=2e-2)
    assert jnp.allclose(proto_s.astype(jnp.float32), proto_ref, atol=2e-2, rtol=2e-2)

    print("KERNEL_OK")
</pallas_src>

<mosaic_0001>
module attributes {stable_mosaic.version = 11 : i64} {
  func.func @_resident_kernel(%arg0: i32, %arg1: memref<16x128xbf16, #tpu.memory_space<vmem>>, %arg2: memref<128x128xbf16, #tpu.memory_space<vmem>>, %arg3: memref<1x128xf32, #tpu.memory_space<vmem>>, %arg4: memref<128x128xbf16, #tpu.memory_space<vmem>>, %arg5: memref<1x128xf32, #tpu.memory_space<vmem>>, %arg6: memref<128x128xbf16, #tpu.memory_space<vmem>>, %arg7: memref<1x128xf32, #tpu.memory_space<vmem>>, %arg8: memref<128x128xbf16, #tpu.memory_space<vmem>>, %arg9: memref<1x128xf32, #tpu.memory_space<vmem>>, %arg10: memref<128x128xbf16, #tpu.memory_space<vmem>>, %arg11: memref<16x128xbf16, #tpu.memory_space<vmem>>, %arg12: memref<16x128xbf16, #tpu.memory_space<vmem>>) attributes {dimension_semantics = [#tpu.dimension_semantics<parallel>], iteration_bounds = array<i64: 1>, scalar_prefetch = 0 : i64, scratch_operands = 0 : i64, tpu.core_type = #tpu.core_type<tc>, window_params = [{transform_indices = @transform_0, window_bounds = array<i64: 16, 128>}, {pipeline_mode = #tpu.pipeline_mode<synchronous>, transform_indices = @transform_1, window_bounds = array<i64: 128, 128>}, {pipeline_mode = #tpu.pipeline_mode<synchronous>, transform_indices = @transform_2, window_bounds = array<i64: 1, 128>}, {pipeline_mode = #tpu.pipeline_mode<synchronous>, transform_indices = @transform_3, window_bounds = array<i64: 128, 128>}, {pipeline_mode = #tpu.pipeline_mode<synchronous>, transform_indices = @transform_4, window_bounds = array<i64: 1, 128>}, {pipeline_mode = #tpu.pipeline_mode<synchronous>, transform_indices = @transform_5, window_bounds = array<i64: 128, 128>}, {pipeline_mode = #tpu.pipeline_mode<synchronous>, transform_indices = @transform_6, window_bounds = array<i64: 1, 128>}, {pipeline_mode = #tpu.pipeline_mode<synchronous>, transform_indices = @transform_7, window_bounds = array<i64: 128, 128>}, {pipeline_mode = #tpu.pipeline_mode<synchronous>, transform_indices = @transform_8, window_bounds = array<i64: 1, 128>}, {pipeline_mode = #tpu.pipeline_mode<synchronous>, transform_indices = @transform_9, window_bounds = array<i64: 128, 128>}, {transform_indices = @transform_10, window_bounds = array<i64: 16, 128>}, {transform_indices = @transform_11, window_bounds = array<i64: 16, 128>}]} {
    %c0 = arith.constant 0 : index
    %c0_0 = arith.constant 0 : index
    %0 = vector.load %arg1[%c0, %c0_0] : memref<16x128xbf16, #tpu.memory_space<vmem>>, vector<16x128xbf16>
    %c0_1 = arith.constant 0 : index
    %c0_2 = arith.constant 0 : index
    %1 = vector.load %arg2[%c0_1, %c0_2] : memref<128x128xbf16, #tpu.memory_space<vmem>>, vector<128x128xbf16>
    %cst = arith.constant dense<0.000000e+00> : vector<16x128xf32>
    %2 = tpu.matmul %0, %1, %cst {dimension_numbers = #tpu.dot_dimension_numbers<[1], [0], [0], [1], [0, 0, 1, 1], [], []>} : vector<16x128xbf16>, vector<128x128xbf16>, vector<16x128xf32> -> vector<16x128xf32>
    %c0_3 = arith.constant 0 : index
    %c0_4 = arith.constant 0 : index
    %3 = vector.load %arg3[%c0_3, %c0_4] : memref<1x128xf32, #tpu.memory_space<vmem>>, vector<1x128xf32>
    %4 = vector.broadcast %3 : vector<1x128xf32> to vector<16x128xf32>
    %5 = arith.addf %2, %4 : vector<16x128xf32>
    %cst_5 = arith.constant 0.000000e+00 : f32
    %6 = vector.broadcast %cst_5 : f32 to vector<16x128xf32>
    %7 = arith.maximumf %5, %6 : vector<16x128xf32>
    %8 = arith.truncf %7 : vector<16x128xf32> to vector<16x128xbf16>
    %c0_6 = arith.constant 0 : index
    %c0_7 = arith.constant 0 : index
    %9 = vector.load %arg4[%c0_6, %c0_7] : memref<128x128xbf16, #tpu.memory_space<vmem>>, vector<128x128xbf16>
    %cst_8 = arith.constant dense<0.000000e+00> : vector<16x128xf32>
    %10 = tpu.matmul %8, %9, %cst_8 {dimension_numbers = #tpu.dot_dimension_numbers<[1], [0], [0], [1], [0, 0, 1, 1], [], []>} : vector<16x128xbf16>, vector<128x128xbf16>, vector<16x128xf32> -> vector<16x128xf32>
    %c0_9 = arith.constant 0 : index
    %c0_10 = arith.constant 0 : index
    %11 = vector.load %arg5[%c0_9, %c0_10] : memref<1x128xf32, #tpu.memory_space<vmem>>, vector<1x128xf32>
    %12 = vector.broadcast %11 : vector<1x128xf32> to vector<16x128xf32>
    %13 = arith.addf %10, %12 : vector<16x128xf32>
    %14 = arith.truncf %13 : vector<16x128xf32> to vector<16x128xbf16>
    %c0_11 = arith.constant 0 : index
    %c0_12 = arith.constant 0 : index
    %15 = vector.load %arg6[%c0_11, %c0_12] : memref<128x128xbf16, #tpu.memory_space<vmem>>, vector<128x128xbf16>
    %cst_13 = arith.constant dense<0.000000e+00> : vector<16x128xf32>
    %16 = tpu.matmul %14, %15, %cst_13 {dimension_numbers = #tpu.dot_dimension_numbers<[1], [0], [0], [1], [0, 0, 1, 1], [], []>} : vector<16x128xbf16>, vector<128x128xbf16>, vector<16x128xf32> -> vector<16x128xf32>
    %c0_14 = arith.constant 0 : index
    %c0_15 = arith.constant 0 : index
    %17 = vector.load %arg7[%c0_14, %c0_15] : memref<1x128xf32, #tpu.memory_space<vmem>>, vector<1x128xf32>
    %18 = vector.broadcast %17 : vector<1x128xf32> to vector<16x128xf32>
    %19 = arith.addf %16, %18 : vector<16x128xf32>
    %cst_16 = arith.constant 0.000000e+00 : f32
    %20 = vector.broadcast %cst_16 : f32 to vector<16x128xf32>
    %21 = arith.maximumf %19, %20 : vector<16x128xf32>
    %22 = arith.truncf %21 : vector<16x128xf32> to vector<16x128xbf16>
    %c0_17 = arith.constant 0 : index
    %c0_18 = arith.constant 0 : index
    %23 = vector.load %arg8[%c0_17, %c0_18] : memref<128x128xbf16, #tpu.memory_space<vmem>>, vector<128x128xbf16>
    %cst_19 = arith.constant dense<0.000000e+00> : vector<16x128xf32>
    %24 = tpu.matmul %22, %23, %cst_19 {dimension_numbers = #tpu.dot_dimension_numbers<[1], [0], [0], [1], [0, 0, 1, 1], [], []>} : vector<16x128xbf16>, vector<128x128xbf16>, vector<16x128xf32> -> vector<16x128xf32>
    %c0_20 = arith.constant 0 : index
    %c0_21 = arith.constant 0 : index
    %25 = vector.load %arg9[%c0_20, %c0_21] : memref<1x128xf32, #tpu.memory_space<vmem>>, vector<1x128xf32>
    %26 = vector.broadcast %25 : vector<1x128xf32> to vector<16x128xf32>
    %27 = arith.addf %24, %26 : vector<16x128xf32>
    %28 = arith.truncf %27 : vector<16x128xf32> to vector<16x128xbf16>
    %c0_22 = arith.constant 0 : index
    %c0_23 = arith.constant 0 : index
    %29 = vector.load %arg10[%c0_22, %c0_23] : memref<128x128xbf16, #tpu.memory_space<vmem>>, vector<128x128xbf16>
    %cst_24 = arith.constant dense<0.000000e+00> : vector<16x128xf32>
    %30 = tpu.matmul %28, %29, %cst_24 {dimension_numbers = #tpu.dot_dimension_numbers<[1], [0], [0], [1], [0, 0, 1, 1], [], []>} : vector<16x128xbf16>, vector<128x128xbf16>, vector<16x128xf32> -> vector<16x128xf32>
    %c0_25 = arith.constant 0 : index
    %c0_26 = arith.constant 0 : index
    %31 = vector.load %arg11[%c0_25, %c0_26] : memref<16x128xbf16, #tpu.memory_space<vmem>>, vector<16x128xbf16>
    tpu.vector_store %arg11[%c0_25, %c0_26], %28 {strides = array<i32>} : memref<16x128xbf16, #tpu.memory_space<vmem>>, vector<16x128xbf16>,
    %32 = arith.truncf %30 : vector<16x128xf32> to vector<16x128xbf16>
    %c0_27 = arith.constant 0 : index
    %c0_28 = arith.constant 0 : index
    %33 = vector.load %arg12[%c0_27, %c0_28] : memref<16x128xbf16, #tpu.memory_space<vmem>>, vector<16x128xbf16>
    tpu.vector_store %arg12[%c0_27, %c0_28], %32 {strides = array<i32>} : memref<16x128xbf16, #tpu.memory_space<vmem>>, vector<16x128xbf16>,
    return
  }
  func.func @transform_0(%arg0: i32) -> (i32, i32) {
    %c0_i32 = arith.constant 0 : i32
    %c0_i32_0 = arith.constant 0 : i32
    return %arg0, %c0_i32 : i32, i32
  }
  func.func @transform_1(%arg0: i32) -> (i32, i32) {
    %c0_i32 = arith.constant 0 : i32
    %c0_i32_0 = arith.constant 0 : i32
    %c0_i32_1 = arith.constant 0 : i32
    return %c0_i32, %c0_i32_0 : i32, i32
  }
  func.func @transform_2(%arg0: i32) -> (i32, i32) {
    %c0_i32 = arith.constant 0 : i32
    %c0_i32_0 = arith.constant 0 : i32
    %c0_i32_1 = arith.constant 0 : i32
    return %c0_i32, %c0_i32_0 : i32, i32
  }
  func.func @transform_3(%arg0: i32) -> (i32, i32) {
    %c0_i32 = arith.constant 0 : i32
    %c0_i32_0 = arith.constant 0 : i32
    %c0_i32_1 = arith.constant 0 : i32
    return %c0_i32, %c0_i32_0 : i32, i32
  }
  func.func @transform_4(%arg0: i32) -> (i32, i32) {
    %c0_i32 = arith.constant 0 : i32
    %c0_i32_0 = arith.constant 0 : i32
    %c0_i32_1 = arith.constant 0 : i32
    return %c0_i32, %c0_i32_0 : i32, i32
  }
  func.func @transform_5(%arg0: i32) -> (i32, i32) {
    %c0_i32 = arith.constant 0 : i32
    %c0_i32_0 = arith.constant 0 : i32
    %c0_i32_1 = arith.constant 0 : i32
    return %c0_i32, %c0_i32_0 : i32, i32
  }
  func.func @transform_6(%arg0: i32) -> (i32, i32) {
    %c0_i32 = arith.constant 0 : i32
    %c0_i32_0 = arith.constant 0 : i32
    %c0_i32_1 = arith.constant 0 : i32
    return %c0_i32, %c0_i32_0 : i32, i32
  }
  func.func @transform_7(%arg0: i32) -> (i32, i32) {
    %c0_i32 = arith.constant 0 : i32
    %c0_i32_0 = arith.constant 0 : i32
    %c0_i32_1 = arith.constant 0 : i32
    return %c0_i32, %c0_i32_0 : i32, i32
  }
  func.func @transform_8(%arg0: i32) -> (i32, i32) {
    %c0_i32 = arith.constant 0 : i32
    %c0_i32_0 = arith.constant 0 : i32
    %c0_i32_1 = arith.constant 0 : i32
    return %c0_i32, %c0_i32_0 : i32, i32
  }
  func.func @transform_9(%arg0: i32) -> (i32, i32) {
    %c0_i32 = arith.constant 0 : i32
    %c0_i32_0 = arith.constant 0 : i32
    %c0_i32_1 = arith.constant 0 : i32
    return %c0_i32, %c0_i32_0 : i32, i32
  }
  func.func @transform_10(%arg0: i32) -> (i32, i32) {
    %c0_i32 = arith.constant 0 : i32
    %c0_i32_0 = arith.constant 0 : i32
    return %arg0, %c0_i32 : i32, i32
  }
  func.func @transform_11(%arg0: i32) -> (i32, i32) {
    %c0_i32 = arith.constant 0 : i32
    %c0_i32_0 = arith.constant 0 : i32
    return %arg0, %c0_i32 : i32, i32
  }
}

module attributes {stable_mosaic.version = 11 : i64} {
  func.func @_resident_kernel(%arg0: i32, %arg1: memref<16x128xbf16, #tpu.memory_space<vmem>>, %arg2: memref<128x128xbf16, #tpu.memory_space<vmem>>, %arg3: memref<1x128xf32, #tpu.memory_space<vmem>>, %arg4: memref<128x128xbf16, #tpu.memory_space<vmem>>, %arg5: memref<1x128xf32, #tpu.memory_space<vmem>>, %arg6: memref<128x128xbf16, #tpu.memory_space<vmem>>, %arg7: memref<1x128xf32, #tpu.memory_space<vmem>>, %arg8: memref<128x128xbf16, #tpu.memory_space<vmem>>, %arg9: memref<1x128xf32, #tpu.memory_space<vmem>>, %arg10: memref<128x128xbf16, #tpu.memory_space<vmem>>, %arg11: memref<16x128xbf16, #tpu.memory_space<vmem>>, %arg12: memref<16x128xbf16, #tpu.memory_space<vmem>>) attributes {dimension_semantics = [#tpu.dimension_semantics<parallel>], iteration_bounds = array<i64: 1>, scalar_prefetch = 0 : i64, scratch_operands = 0 : i64, tpu.core_type = #tpu.core_type<tc>, window_params = [{transform_indices = @transform_0, window_bounds = array<i64: 16, 128>}, {pipeline_mode = #tpu.pipeline_mode<synchronous>, transform_indices = @transform_1, window_bounds = array<i64: 128, 128>}, {pipeline_mode = #tpu.pipeline_mode<synchronous>, transform_indices = @transform_2, window_bounds = array<i64: 1, 128>}, {pipeline_mode = #tpu.pipeline_mode<synchronous>, transform_indices = @transform_3, window_bounds = array<i64: 128, 128>}, {pipeline_mode = #tpu.pipeline_mode<synchronous>, transform_indices = @transform_4, window_bounds = array<i64: 1, 128>}, {pipeline_mode = #tpu.pipeline_mode<synchronous>, transform_indices = @transform_5, window_bounds = array<i64: 128, 128>}, {pipeline_mode = #tpu.pipeline_mode<synchronous>, transform_indices = @transform_6, window_bounds = array<i64: 1, 128>}, {pipeline_mode = #tpu.pipeline_mode<synchronous>, transform_indices = @transform_7, window_bounds = array<i64: 128, 128>}, {pipeline_mode = #tpu.pipeline_mode<synchronous>, transform_indices = @transform_8, window_bounds = array<i64: 1, 128>}, {pipeline_mode = #tpu.pipeline_mode<synchronous>, transform_indices = @transform_9, window_bounds = array<i64: 128, 128>}, {transform_indices = @transform_10, window_bounds = array<i64: 16, 128>}, {transform_indices = @transform_11, window_bounds = array<i64: 16, 128>}]} {
    %c0 = arith.constant 0 : index
    %c0_0 = arith.constant 0 : index
    %0 = vector.load %arg1[%c0, %c0_0] : memref<16x128xbf16, #tpu.memory_space<vmem>>, vector<16x128xbf16>
    %c0_1 = arith.constant 0 : index
    %c0_2 = arith.constant 0 : index
    %1 = vector.load %arg2[%c0_1, %c0_2] : memref<128x128xbf16, #tpu.memory_space<vmem>>, vector<128x128xbf16>
    %cst = arith.constant dense<0.000000e+00> : vector<16x128xf32>
    %2 = tpu.matmul %0, %1, %cst {dimension_numbers = #tpu.dot_dimension_numbers<[1], [0], [0], [1], [0, 0, 1, 1], [], []>} : vector<16x128xbf16>, vector<128x128xbf16>, vector<16x128xf32> -> vector<16x128xf32>
    %c0_3 = arith.constant 0 : index
    %c0_4 = arith.constant 0 : index
    %3 = vector.load %arg3[%c0_3, %c0_4] : memref<1x128xf32, #tpu.memory_space<vmem>>, vector<1x128xf32>
    %4 = vector.broadcast %3 : vector<1x128xf32> to vector<16x128xf32>
    %5 = arith.addf %2, %4 : vector<16x128xf32>
    %cst_5 = arith.constant 0.000000e+00 : f32
    %6 = vector.broadcast %cst_5 : f32 to vector<16x128xf32>
    %7 = arith.maximumf %5, %6 : vector<16x128xf32>
    %8 = arith.truncf %7 : vector<16x128xf32> to vector<16x128xbf16>
    %c0_6 = arith.constant 0 : index
    %c0_7 = arith.constant 0 : index
    %9 = vector.load %arg4[%c0_6, %c0_7] : memref<128x128xbf16, #tpu.memory_space<vmem>>, vector<128x128xbf16>
    %cst_8 = arith.constant dense<0.000000e+00> : vector<16x128xf32>
    %10 = tpu.matmul %8, %9, %cst_8 {dimension_numbers = #tpu.dot_dimension_numbers<[1], [0], [0], [1], [0, 0, 1, 1], [], []>} : vector<16x128xbf16>, vector<128x128xbf16>, vector<16x128xf32> -> vector<16x128xf32>
    %c0_9 = arith.constant 0 : index
    %c0_10 = arith.constant 0 : index
    %11 = vector.load %arg5[%c0_9, %c0_10] : memref<1x128xf32, #tpu.memory_space<vmem>>, vector<1x128xf32>
    %12 = vector.broadcast %11 : vector<1x128xf32> to vector<16x128xf32>
    %13 = arith.addf %10, %12 : vector<16x128xf32>
    %14 = arith.truncf %13 : vector<16x128xf32> to vector<16x128xbf16>
    %c0_11 = arith.constant 0 : index
    %c0_12 = arith.constant 0 : index
    %15 = vector.load %arg6[%c0_11, %c0_12] : memref<128x128xbf16, #tpu.memory_space<vmem>>, vector<128x128xbf16>
    %cst_13 = arith.constant dense<0.000000e+00> : vector<16x128xf32>
    %16 = tpu.matmul %14, %15, %cst_13 {dimension_numbers = #tpu.dot_dimension_numbers<[1], [0], [0], [1], [0, 0, 1, 1], [], []>} : vector<16x128xbf16>, vector<128x128xbf16>, vector<16x128xf32> -> vector<16x128xf32>
    %c0_14 = arith.constant 0 : index
    %c0_15 = arith.constant 0 : index
    %17 = vector.load %arg7[%c0_14, %c0_15] : memref<1x128xf32, #tpu.memory_space<vmem>>, vector<1x128xf32>
    %18 = vector.broadcast %17 : vector<1x128xf32> to vector<16x128xf32>
    %19 = arith.addf %16, %18 : vector<16x128xf32>
    %cst_16 = arith.constant 0.000000e+00 : f32
    %20 = vector.broadcast %cst_16 : f32 to vector<16x128xf32>
    %21 = arith.maximumf %19, %20 : vector<16x128xf32>
    %22 = arith.truncf %21 : vector<16x128xf32> to vector<16x128xbf16>
    %c0_17 = arith.constant 0 : index
    %c0_18 = arith.constant 0 : index
    %23 = vector.load %arg8[%c0_17, %c0_18] : memref<128x128xbf16, #tpu.memory_space<vmem>>, vector<128x128xbf16>
    %cst_19 = arith.constant dense<0.000000e+00> : vector<16x128xf32>
    %24 = tpu.matmul %22, %23, %cst_19 {dimension_numbers = #tpu.dot_dimension_numbers<[1], [0], [0], [1], [0, 0, 1, 1], [], []>} : vector<16x128xbf16>, vector<128x128xbf16>, vector<16x128xf32> -> vector<16x128xf32>
    %c0_20 = arith.constant 0 : index
    %c0_21 = arith.constant 0 : index
    %25 = vector.load %arg9[%c0_20, %c0_21] : memref<1x128xf32, #tpu.memory_space<vmem>>, vector<1x128xf32>
    %26 = vector.broadcast %25 : vector<1x128xf32> to vector<16x128xf32>
    %27 = arith.addf %24, %26 : vector<16x128xf32>
    %28 = arith.truncf %27 : vector<16x128xf32> to vector<16x128xbf16>
    %c0_22 = arith.constant 0 : index
    %c0_23 = arith.constant 0 : index
    %29 = vector.load %arg10[%c0_22, %c0_23] : memref<128x128xbf16, #tpu.memory_space<vmem>>, vector<128x128xbf16>
    %cst_24 = arith.constant dense<0.000000e+00> : vector<16x128xf32>
    %30 = tpu.matmul %28, %29, %cst_24 {dimension_numbers = #tpu.dot_dimension_numbers<[1], [0], [0], [1], [0, 0, 1, 1], [], []>} : vector<16x128xbf16>, vector<128x128xbf16>, vector<16x128xf32> -> vector<16x128xf32>
    %c0_25 = arith.constant 0 : index
    %c0_26 = arith.constant 0 : index
    %31 = vector.load %arg11[%c0_25, %c0_26] : memref<16x128xbf16, #tpu.memory_space<vmem>>, vector<16x128xbf16>
    tpu.vector_store %arg11[%c0_25, %c0_26], %28 {strides = array<i32>} : memref<16x128xbf16, #tpu.memory_space<vmem>>, vector<16x128xbf16>,
    %32 = arith.truncf %30 : vector<16x128xf32> to vector<16x128xbf16>
    %c0_27 = arith.constant 0 : index
    %c0_28 = arith.constant 0 : index
    %33 = vector.load %arg12[%c0_27, %c0_28] : memref<16x128xbf16, #tpu.memory_space<vmem>>, vector<16x128xbf16>
    tpu.vector_store %arg12[%c0_27, %c0_28], %32 {strides = array<i32>} : memref<16x128xbf16, #tpu.memory_space<vmem>>, vector<16x128xbf16>,
    return
  }
  func.func @transform_0(%arg0: i32) -> (i32, i32) {
    %c0_i32 = arith.constant 0 : i32
    %c0_i32_0 = arith.constant 0 : i32
    return %arg0, %c0_i32 : i32, i32
  }
  func.func @transform_1(%arg0: i32) -> (i32, i32) {
    %c0_i32 = arith.constant 0 : i32
    %c0_i32_0 = arith.constant 0 : i32
    %c0_i32_1 = arith.constant 0 : i32
    return %c0_i32, %c0_i32_0 : i32, i32
  }
  func.func @transform_2(%arg0: i32) -> (i32, i32) {
    %c0_i32 = arith.constant 0 : i32
    %c0_i32_0 = arith.constant 0 : i32
    %c0_i32_1 = arith.constant 0 : i32
    return %c0_i32, %c0_i32_0 : i32, i32
  }
  func.func @transform_3(%arg0: i32) -> (i32, i32) {
    %c0_i32 = arith.constant 0 : i32
    %c0_i32_0 = arith.constant 0 : i32
    %c0_i32_1 = arith.constant 0 : i32
    return %c0_i32, %c0_i32_0 : i32, i32
  }
  func.func @transform_4(%arg0: i32) -> (i32, i32) {
    %c0_i32 = arith.constant 0 : i32
    %c0_i32_0 = arith.constant 0 : i32
    %c0_i32_1 = arith.constant 0 : i32
    return %c0_i32, %c0_i32_0 : i32, i32
  }
  func.func @transform_5(%arg0: i32) -> (i32, i32) {
    %c0_i32 = arith.constant 0 : i32
    %c0_i32_0 = arith.constant 0 : i32
    %c0_i32_1 = arith.constant 0 : i32
    return %c0_i32, %c0_i32_0 : i32, i32
  }
  func.func @transform_6(%arg0: i32) -> (i32, i32) {
    %c0_i32 = arith.constant 0 : i32
    %c0_i32_0 = arith.constant 0 : i32
    %c0_i32_1 = arith.constant 0 : i32
    return %c0_i32, %c0_i32_0 : i32, i32
  }
  func.func @transform_7(%arg0: i32) -> (i32, i32) {
    %c0_i32 = arith.constant 0 : i32
    %c0_i32_0 = arith.constant 0 : i32
    %c0_i32_1 = arith.constant 0 : i32
    return %c0_i32, %c0_i32_0 : i32, i32
  }
  func.func @transform_8(%arg0: i32) -> (i32, i32) {
    %c0_i32 = arith.constant 0 : i32
    %c0_i32_0 = arith.constant 0 : i32
    %c0_i32_1 = arith.constant 0 : i32
    return %c0_i32, %c0_i32_0 : i32, i32
  }
  func.func @transform_9(%arg0: i32) -> (i32, i32) {
    %c0_i32 = arith.constant 0 : i32
    %c0_i32_0 = arith.constant 0 : i32
    %c0_i32_1 = arith.constant 0 : i32
    return %c0_i32, %c0_i32_0 : i32, i32
  }
  func.func @transform_10(%arg0: i32) -> (i32, i32) {
    %c0_i32 = arith.constant 0 : i32
    %c0_i32_0 = arith.constant 0 : i32
    return %arg0, %c0_i32 : i32, i32
  }
  func.func @transform_11(%arg0: i32) -> (i32, i32) {
    %c0_i32 = arith.constant 0 : i32
    %c0_i32_0 = arith.constant 0 : i32
    return %arg0, %c0_i32 : i32, i32
  }
}

</mosaic_0001>

<llo_original>
// kernel: tpu_custom_call.1
$region0: #{tpu_custom_call.1}
  #allocation0 [shape = 'u32[]', space=smem, size = 0x4, offset = 0x4, fixed_abs, tag = 'smem constant byte address 0x4 - core index']
  #allocation1 [shape = 'u32[144,128]{1,0:T(1,128)}', space=vmem, size = 0x12000, scoped, tag = 'internal scratch']
  %s0 = inlined_call_operand.hbm [shape: bf16[16,128], index: 0, kind: input, shape index: {}]
  %s1 = inlined_call_operand.hbm [shape: bf16[128,128], index: 1, kind: input, shape index: {}]
  %s2 = inlined_call_operand.hbm [shape: f32[1,128], index: 2, kind: input, shape index: {}]
  %s3 = inlined_call_operand.hbm [shape: bf16[128,128], index: 3, kind: input, shape index: {}]
  %s4 = inlined_call_operand.hbm [shape: f32[1,128], index: 4, kind: input, shape index: {}]
  %s5 = inlined_call_operand.hbm [shape: bf16[128,128], index: 5, kind: input, shape index: {}]
  %s6 = inlined_call_operand.hbm [shape: f32[1,128], index: 6, kind: input, shape index: {}]
  %s7 = inlined_call_operand.hbm [shape: bf16[128,128], index: 7, kind: input, shape index: {}]
  %s8 = inlined_call_operand.hbm [shape: f32[1,128], index: 8, kind: input, shape index: {}]
  %s9 = inlined_call_operand.hbm [shape: bf16[128,128], index: 9, kind: input, shape index: {}]
  %s10 = inlined_call_operand.hbm [shape: bf16[16,128], index: 10, kind: output, shape index: {0}]
  %s11 = inlined_call_operand.hbm [shape: bf16[16,128], index: 11, kind: output, shape index: {1}]
  %12 = xla_tuple %s10, %s11
  %s13 = sld [smem:[#allocation0]]
  $region98: #{tpu_custom_call.1} parent=0
    _
  %s15 = ssub.s32 1, %s13
  %s16 = scalar_select 0, %s15, %s13
  $region1: #{tpu_custom_call.1} parent=0
    #allocation2 [shape = 'u8[4096]{0}', space=vmem, size = 0x1000, scoped, tag = 'input window, operand 0, single buffered']
    #allocation3 [shape = 's32[1]{0}', space=sflag, size = 0x4, scoped, tag = 'scoped memory for tpu_custom_call.1']
    #allocation4 [shape = 's32[1]{0}', space=sflag, size = 0x4, scoped, tag = 'scoped memory for tpu_custom_call.1']
    #allocation5 [shape = 'u8[32768]{0}', space=vmem, size = 0x8000, scoped, tag = 'input window, operand 1, single buffered']
    #allocation6 [shape = 's32[1]{0}', space=sflag, size = 0x4, scoped, tag = 'scoped memory for tpu_custom_call.1']
    #allocation7 [shape = 'u8[512]{0}', space=vmem, size = 0x400, scoped, tag = 'input window, operand 2, single buffered']
    #allocation8 [shape = 'u8[32768]{0}', space=vmem, size = 0x8000, scoped, tag = 'input window, operand 3, single buffered']
    #allocation9 [shape = 's32[1]{0}', space=sflag, size = 0x4, scoped, tag = 'scoped memory for tpu_custom_call.1']
    #allocation10 [shape = 'u8[512]{0}', space=vmem, size = 0x400, scoped, tag = 'input window, operand 4, single buffered']
    #allocation11 [shape = 'u8[32768]{0}', space=vmem, size = 0x8000, scoped, tag = 'input window, operand 5, single buffered']
    #allocation12 [shape = 's32[1]{0}', space=sflag, size = 0x4, scoped, tag = 'scoped memory for tpu_custom_call.1']
    #allocation13 [shape = 'u8[512]{0}', space=vmem, size = 0x400, scoped, tag = 'input window, operand 6, single buffered']
    #allocation14 [shape = 'u8[32768]{0}', space=vmem, size = 0x8000, scoped, tag = 'input window, operand 7, single buffered']
    #allocation15 [shape = 's32[1]{0}', space=sflag, size = 0x4, scoped, tag = 'scoped memory for tpu_custom_call.1']
    #allocation16 [shape = 'u8[512]{0}', space=vmem, size = 0x400, scoped, tag = 'input window, operand 8, single buffered']
    #allocation17 [shape = 'u8[32768]{0}', space=vmem, size = 0x8000, scoped, tag = 'input window, operand 9, single buffered']
    #allocation18 [shape = 's32[1]{0}', space=sflag, size = 0x4, scoped, tag = 'scoped memory for tpu_custom_call.1']
    #allocation19 [shape = 'u8[4096]{0}', space=vmem, size = 0x1000, scoped, tag = 'output window, operand 0, single buffered']
    #allocation20 [shape = 'u8[4096]{0}', space=vmem, size = 0x1000, scoped, tag = 'output window, operand 1, single buffered']
    #allocation21 [shape = 's32[1]{0}', space=sflag, size = 0x4, scoped, tag = 'scoped memory for tpu_custom_call.1']
    %17 = vsyncpa [#allocation3], 0
    %18 = vsyncpa [#allocation6], 0
    %19 = vsyncpa [#allocation9], 0
    %20 = vsyncpa [#allocation12], 0
    %21 = vsyncpa [#allocation15], 0
    %22 = vsyncpa [#allocation18], 0
    %23 = vsyncpa [#allocation4], 0
    %24 = vsyncpa [#allocation21], 0
    // Predicated region
    $region2: #{tpu_custom_call.1} parent=1 // pred_check
      _
    $region3: #{tpu_custom_call.1} parent=1 // pred_check_branch
      %26 = sbr.rel (0) target = $region5
    $region4: #{tpu_custom_call.1} parent=1 // pred_region
      %s28 = ssub.s32 128, 128
      %29 = vsyncadd [#allocation3], %s28
      %s30 = sshll.u32 [#allocation2], 4
      %s31 = int_to_ptr.vmem [resolvable:$true] %s30
      %36 = dma.hbm_to_vmem [thread:$0]  %s0, 128, %s31, [#allocation3], 64, 64, 4
    $region5: #{tpu_custom_call.1} parent=1 // pred_fallthru
      _
    // Predicated region
    $region6: #{tpu_custom_call.1} parent=1 // pred_check
      _
    $region7: #{tpu_custom_call.1} parent=1 // pred_check_branch
      %38 = sbr.rel (0) target = $region9
    $region8: #{tpu_custom_call.1} parent=1 // pred_region
      %s40 = ssub.s32 1024, 1024
      %41 = vsyncadd [#allocation6], %s40
      %s42 = sshll.u32 [#allocation5], 4
      %s43 = int_to_ptr.vmem [resolvable:$true] %s42
      %48 = dma.hbm_to_vmem [thread:$0]  %s1, 1024, %s43, [#allocation6], 64, 64, 4
    $region9: #{tpu_custom_call.1} parent=1 // pred_fallthru
      _
    // Predicated region
    $region10: #{tpu_custom_call.1} parent=1 // pred_check
      _
    $region11: #{tpu_custom_call.1} parent=1 // pred_check_branch
      %50 = sbr.rel (0) target = $region13
    $region12: #{tpu_custom_call.1} parent=1 // pred_region
      %s52 = ssub.s32 16, 16
      %53 = vsyncadd [#allocation6], %s52
      %s55 = sshll.u32 [#allocation7], 4
      %s56 = int_to_ptr.vmem [resolvable:$true] %s55
      %58 = dma.hbm_to_vmem [thread:$0]  %s2, 16, %s56, [#allocation6]
    $region13: #{tpu_custom_call.1} parent=1 // pred_fallthru
      _
    // Predicated region
    $region14: #{tpu_custom_call.1} parent=1 // pred_check
      _
    $region15: #{tpu_custom_call.1} parent=1 // pred_check_branch
      %60 = sbr.rel (0) target = $region17
    $region16: #{tpu_custom_call.1} parent=1 // pred_region
      %s62 = ssub.s32 1024, 1024
      %63 = vsyncadd [#allocation9], %s62
      %s64 = sshll.u32 [#allocation8], 4
      %s65 = int_to_ptr.vmem [resolvable:$true] %s64
      %70 = dma.hbm_to_vmem [thread:$0]  %s3, 1024, %s65, [#allocation9], 64, 64, 4
    $region17: #{tpu_custom_call.1} parent=1 // pred_fallthru
      _
    // Predicated region
    $region18: #{tpu_custom_call.1} parent=1 // pred_check
      _
    $region19: #{tpu_custom_call.1} parent=1 // pred_check_branch
      %72 = sbr.rel (0) target = $region21
    $region20: #{tpu_custom_call.1} parent=1 // pred_region
      %s74 = ssub.s32 16, 16
      %75 = vsyncadd [#allocation9], %s74
      %s77 = sshll.u32 [#allocation10], 4
      %s78 = int_to_ptr.vmem [resolvable:$true] %s77
      %80 = dma.hbm_to_vmem [thread:$0]  %s4, 16, %s78, [#allocation9]
    $region21: #{tpu_custom_call.1} parent=1 // pred_fallthru
      _
    // Predicated region
    $region22: #{tpu_custom_call.1} parent=1 // pred_check
      _
    $region23: #{tpu_custom_call.1} parent=1 // pred_check_branch
      %82 = sbr.rel (0) target = $region25
    $region24: #{tpu_custom_call.1} parent=1 // pred_region
      %s84 = ssub.s32 1024, 1024
      %85 = vsyncadd [#allocation12], %s84
      %s86 = sshll.u32 [#allocation11], 4
      %s87 = int_to_ptr.vmem [resolvable:$true] %s86
      %92 = dma.hbm_to_vmem [thread:$0]  %s5, 1024, %s87, [#allocation12], 64, 64, 4
    $region25: #{tpu_custom_call.1} parent=1 // pred_fallthru
      _
    // Predicated region
    $region26: #{tpu_custom_call.1} parent=1 // pred_check
      _
    $region27: #{tpu_custom_call.1} parent=1 // pred_check_branch
      %94 = sbr.rel (0) target = $region29
    $region28: #{tpu_custom_call.1} parent=1 // pred_region
      %s96 = ssub.s32 16, 16
      %97 = vsyncadd [#allocation12], %s96
      %s99 = sshll.u32 [#allocation13], 4
      %s100 = int_to_ptr.vmem [resolvable:$true] %s99
      %102 = dma.hbm_to_vmem [thread:$0]  %s6, 16, %s100, [#allocation12]
    $region29: #{tpu_custom_call.1} parent=1 // pred_fallthru
      _
    // Predicated region
    $region30: #{tpu_custom_call.1} parent=1 // pred_check
      _
    $region31: #{tpu_custom_call.1} parent=1 // pred_check_branch
      %104 = sbr.rel (0) target = $region33
    $region32: #{tpu_custom_call.1} parent=1 // pred_region
      %s106 = ssub.s32 1024, 1024
      %107 = vsyncadd [#allocation15], %s106
      %s108 = sshll.u32 [#allocation14], 4
      %s109 = int_to_ptr.vmem [resolvable:$true] %s108
      %114 = dma.hbm_to_vmem [thread:$0]  %s7, 1024, %s109, [#allocation15], 64, 64, 4
    $region33: #{tpu_custom_call.1} parent=1 // pred_fallthru
      _
    // Predicated region
    $region34: #{tpu_custom_call.1} parent=1 // pred_check
      _
    $region35: #{tpu_custom_call.1} parent=1 // pred_check_branch
      %116 = sbr.rel (0) target = $region37
    $region36: #{tpu_custom_call.1} parent=1 // pred_region
      %s118 = ssub.s32 16, 16
      %119 = vsyncadd [#allocation15], %s118
      %s121 = sshll.u32 [#allocation16], 4
      %s122 = int_to_ptr.vmem [resolvable:$true] %s121
      %124 = dma.hbm_to_vmem [thread:$0]  %s8, 16, %s122, [#allocation15]
    $region37: #{tpu_custom_call.1} parent=1 // pred_fallthru
      _
    // Predicated region
    $region38: #{tpu_custom_call.1} parent=1 // pred_check
      _
    $region39: #{tpu_custom_call.1} parent=1 // pred_check_branch
      %126 = sbr.rel (0) target = $region41
    $region40: #{tpu_custom_call.1} parent=1 // pred_region
      %s128 = ssub.s32 1024, 1024
      %129 = vsyncadd [#allocation18], %s128
      %s130 = sshll.u32 [#allocation17], 4
      %s131 = int_to_ptr.vmem [resolvable:$true] %s130
      %136 = dma.hbm_to_vmem [thread:$0]  %s9, 1024, %s131, [#allocation18], 64, 64, 4
    $region41: #{tpu_custom_call.1} parent=1 // pred_fallthru
      _
    // Predicated region
    $region42: #{tpu_custom_call.1} parent=1 // pred_check
      _
    $region43: #{tpu_custom_call.1} parent=1 // pred_check_branch
      %138 = sbr.rel (0) target = $region45
    $region44: #{tpu_custom_call.1} parent=1 // pred_region
      %139 = dma.done [#allocation3], 128
    $region45: #{tpu_custom_call.1} parent=1 // pred_fallthru
      _
    // Predicated region
    $region46: #{tpu_custom_call.1} parent=1 // pred_check
      _
    $region47: #{tpu_custom_call.1} parent=1 // pred_check_branch
      %141 = sbr.rel (0) target = $region49
    $region48: #{tpu_custom_call.1} parent=1 // pred_region
      %142 = dma.done [#allocation6], 1024
    $region49: #{tpu_custom_call.1} parent=1 // pred_fallthru
      _
    // Predicated region
    $region50: #{tpu_custom_call.1} parent=1 // pred_check
      _
    $region51: #{tpu_custom_call.1} parent=1 // pred_check_branch
      %144 = sbr.rel (0) target = $region53
    $region52: #{tpu_custom_call.1} parent=1 // pred_region
      %145 = dma.done [#allocation6], 16
    $region53: #{tpu_custom_call.1} parent=1 // pred_fallthru
      _
    // Predicated region
    $region54: #{tpu_custom_call.1} parent=1 // pred_check
      _
    $region55: #{tpu_custom_call.1} parent=1 // pred_check_branch
      %147 = sbr.rel (0) target = $region57
    $region56: #{tpu_custom_call.1} parent=1 // pred_region
      %148 = dma.done [#allocation9], 1024
    $region57: #{tpu_custom_call.1} parent=1 // pred_fallthru
      _
    // Predicated region
    $region58: #{tpu_custom_call.1} parent=1 // pred_check
      _
    $region59: #{tpu_custom_call.1} parent=1 // pred_check_branch
      %150 = sbr.rel (0) target = $region61
    $region60: #{tpu_custom_call.1} parent=1 // pred_region
      %151 = dma.done [#allocation9], 16
    $region61: #{tpu_custom_call.1} parent=1 // pred_fallthru
      _
    // Predicated region
    $region62: #{tpu_custom_call.1} parent=1 // pred_check
      _
    $region63: #{tpu_custom_call.1} parent=1 // pred_check_branch
      %153 = sbr.rel (0) target = $region65
    $region64: #{tpu_custom_call.1} parent=1 // pred_region
      %154 = dma.done [#allocation12], 1024
    $region65: #{tpu_custom_call.1} parent=1 // pred_fallthru
      _
    // Predicated region
    $region66: #{tpu_custom_call.1} parent=1 // pred_check
      _
    $region67: #{tpu_custom_call.1} parent=1 // pred_check_branch
      %156 = sbr.rel (0) target = $region69
    $region68: #{tpu_custom_call.1} parent=1 // pred_region
      %157 = dma.done [#allocation12], 16
    $region69: #{tpu_custom_call.1} parent=1 // pred_fallthru
      _
    // Predicated region
    $region70: #{tpu_custom_call.1} parent=1 // pred_check
      _
    $region71: #{tpu_custom_call.1} parent=1 // pred_check_branch
      %159 = sbr.rel (0) target = $region73
    $region72: #{tpu_custom_call.1} parent=1 // pred_region
      %160 = dma.done [#allocation15], 1024
    $region73: #{tpu_custom_call.1} parent=1 // pred_fallthru
      _
    // Predicated region
    $region74: #{tpu_custom_call.1} parent=1 // pred_check
      _
    $region75: #{tpu_custom_call.1} parent=1 // pred_check_branch
      %162 = sbr.rel (0) target = $region77
    $region76: #{tpu_custom_call.1} parent=1 // pred_region
      %163 = dma.done [#allocation15], 16
    $region77: #{tpu_custom_call.1} parent=1 // pred_fallthru
      _
    // Predicated region
    $region78: #{tpu_custom_call.1} parent=1 // pred_check
      _
    $region79: #{tpu_custom_call.1} parent=1 // pred_check_branch
      %165 = sbr.rel (0) target = $region81
    $region80: #{tpu_custom_call.1} parent=1 // pred_region
      %166 = dma.done [#allocation18], 1024
    $region81: #{tpu_custom_call.1} parent=1 // pred_fallthru
      _
    %v168 = vld [vmem:[#allocation2] sm:$0xf]
    %v169 = vld [vmem:[#allocation2 + $0x4] sm:$0xf]
    %v170 = vld [vmem:[#allocation5] sm:$0xf]
    %v171 = vld [vmem:[#allocation5 + $0x4] sm:$0xf]
    %v172 = vld [vmem:[#allocation5 + $0x8] sm:$0xf]
    %v173 = vld [vmem:[#allocation5 + $0xc] sm:$0xf]
    %v174 = vld [vmem:[#allocation5 + $0x10] sm:$0xf]
    %v175 = vld [vmem:[#allocation5 + $0x14] sm:$0xf]
    %v176 = vld [vmem:[#allocation5 + $0x18] sm:$0xf]
    %v177 = vld [vmem:[#allocation5 + $0x1c] sm:$0xf]
    %v178 = vld [vmem:[#allocation5 + $0x20] sm:$0xf]
    %v179 = vld [vmem:[#allocation5 + $0x24] sm:$0xf]
    %v180 = vld [vmem:[#allocation5 + $0x28] sm:$0xf]
    %v181 = vld [vmem:[#allocation5 + $0x2c] sm:$0xf]
    %v182 = vld [vmem:[#allocation5 + $0x30] sm:$0xf]
    %v183 = vld [vmem:[#allocation5 + $0x34] sm:$0xf]
    %v184 = vld [vmem:[#allocation5 + $0x38] sm:$0xf]
    %v185 = vld [vmem:[#allocation5 + $0x3c] sm:$0xf]
    %v186 = vld [vmem:[#allocation7] sm:$0x1]
    %v188 = vlaneseq
    %v189 = vshrl.u32 %v188, 7
    %v190 = vsub.s32 0, %v189
    %v191 = vrot.slane %v186, %v190
    %v195 = vunpack.c.l.b16 %v168
    %v196 = vunpack.c.l.b16 %v169
    %v197 = vpack.c.b16 %v196, %v195
    %v215 = vunpack.c.l.b16 %v170
    %v216 = vunpack.c.l.b16 %v171
    %v217 = vunpack.c.l.b16 %v172
    %v218 = vunpack.c.l.b16 %v173
    %v219 = vunpack.c.l.b16 %v174
    %v220 = vunpack.c.l.b16 %v175
    %v221 = vunpack.c.l.b16 %v176
    %v222 = vunpack.c.l.b16 %v177
    %v223 = vunpack.c.l.b16 %v178
    %v224 = vunpack.c.l.b16 %v179
    %v225 = vunpack.c.l.b16 %v180
    %v226 = vunpack.c.l.b16 %v181
    %v227 = vunpack.c.l.b16 %v182
    %v228 = vunpack.c.l.b16 %v183
    %v229 = vunpack.c.l.b16 %v184
    %v230 = vunpack.c.l.b16 %v185
    %v231 = vpack.c.b16 %v216, %v215
    %v232 = vpack.c.b16 %v218, %v217
    %v233 = vpack.c.b16 %v220, %v219
    %v234 = vpack.c.b16 %v222, %v221
    %v235 = vpack.c.b16 %v224, %v223
    %v236 = vpack.c.b16 %v226, %v225
    %v237 = vpack.c.b16 %v228, %v227
    %v238 = vpack.c.b16 %v230, %v229
    %247 = vmatprep.subr.bf16.mxu0 0
    %248 = vmatpush1.bf16.msra.mxu0 %v231
    %249 = vmatprep.subr.bf16.mxu0 0
    %250 = vmatpush1.bf16.msra.mxu0 %v232
    %251 = vmatprep.subr.bf16.mxu0 0
    %252 = vmatpush1.bf16.msra.mxu0 %v233
    %253 = vmatprep.subr.bf16.mxu0 0
    %254 = vmatpush1.bf16.msra.mxu0 %v234
    %255 = vmatprep.subr.bf16.mxu0 0
    %256 = vmatpush1.bf16.msra.mxu0 %v235
    %257 = vmatprep.subr.bf16.mxu0 0
    %258 = vmatpush1.bf16.msra.mxu0 %v236
    %259 = vmatprep.subr.bf16.mxu0 0
    %260 = vmatpush1.bf16.msra.mxu0 %v237
    %261 = vmatprep.subr.bf16.mxu0 0
    %262 = vmatpush1.bf16.msra.mxu0 %v238
    %263 = vmatprep.subr.bf16.mxu0 0
    %264 = vmatpush1.bf16.msra.mxu0 0
    %265 = vmatprep.subr.bf16.mxu0 0
    %266 = vmatpush1.bf16.msra.mxu0 0
    %267 = vmatprep.subr.bf16.mxu0 0
    %268 = vmatpush1.bf16.msra.mxu0 0
    %269 = vmatprep.subr.bf16.mxu0 0
    %270 = vmatpush1.bf16.msra.mxu0 0
    %271 = vmatprep.subr.bf16.mxu0 0
    %272 = vmatpush1.bf16.msra.mxu0 0
    %273 = vmatprep.subr.bf16.mxu0 0
    %274 = vmatpush1.bf16.msra.mxu0 0
    %275 = vmatprep.subr.bf16.mxu0 0
    %276 = vmatpush1.bf16.msra.mxu0 0
    %277 = vmatprep.subr.bf16.mxu0 0
    %278 = vmatpush1.bf16.msra.mxu0 0
    %279 = vmatprep.mubr.bf16.mxu0 0
    %280 = vmatmul.mubr.bf16.gmra.mrb[0].mxu0 %v197
    %v281 = vpop.f32.mrb[0].mxu0
    %v282 = vadd.f32 %v191, %v281
    %v283 = vpop.f32.mrb[0].mxu0
    %v284 = vpop.f32.mrb[0].mxu0
    %v285 = vadd.f32 %v191, %v284
    %v286 = vpop.f32.mrb[0].mxu0
    %287 = vdwg.mxu0
    %v288 = vmax.f32 %v282, 0.0
    %v289 = vmax.f32 %v285, 0.0
    %v290 = vpack.c.bf16 %v289, %v288
    %v291 = vld [vmem:[#allocation8] sm:$0xf]
    %v292 = vld [vmem:[#allocation8 + $0x4] sm:$0xf]
    %v293 = vld [vmem:[#allocation8 + $0x8] sm:$0xf]
    %v294 = vld [vmem:[#allocation8 + $0xc] sm:$0xf]
    %v295 = vld [vmem:[#allocation8 + $0x10] sm:$0xf]
    %v296 = vld [vmem:[#allocation8 + $0x14] sm:$0xf]
    %v297 = vld [vmem:[#allocation8 + $0x18] sm:$0xf]
    %v298 = vld [vmem:[#allocation8 + $0x1c] sm:$0xf]
    %v299 = vld [vmem:[#allocation8 + $0x20] sm:$0xf]
    %v300 = vld [vmem:[#allocation8 + $0x24] sm:$0xf]
    %v301 = vld [vmem:[#allocation8 + $0x28] sm:$0xf]
    %v302 = vld [vmem:[#allocation8 + $0x2c] sm:$0xf]
    %v303 = vld [vmem:[#allocation8 + $0x30] sm:$0xf]
    %v304 = vld [vmem:[#allocation8 + $0x34] sm:$0xf]
    %v305 = vld [vmem:[#allocation8 + $0x38] sm:$0xf]
    %v306 = vld [vmem:[#allocation8 + $0x3c] sm:$0xf]
    %v307 = vld [vmem:[#allocation10] sm:$0x1]
    %v309 = vlaneseq
    %v310 = vshrl.u32 %v309, 7
    %v311 = vsub.s32 0, %v310
    %v312 = vrot.slane %v307, %v311
    %v330 = vunpack.c.l.b16 %v291
    %v331 = vunpack.c.l.b16 %v292
    %v332 = vunpack.c.l.b16 %v293
    %v333 = vunpack.c.l.b16 %v294
    %v334 = vunpack.c.l.b16 %v295
    %v335 = vunpack.c.l.b16 %v296
    %v336 = vunpack.c.l.b16 %v297
    %v337 = vunpack.c.l.b16 %v298
    %v338 = vunpack.c.l.b16 %v299
    %v339 = vunpack.c.l.b16 %v300
    %v340 = vunpack.c.l.b16 %v301
    %v341 = vunpack.c.l.b16 %v302
    %v342 = vunpack.c.l.b16 %v303
    %v343 = vunpack.c.l.b16 %v304
    %v344 = vunpack.c.l.b16 %v305
    %v345 = vunpack.c.l.b16 %v306
    %v346 = vpack.c.b16 %v331, %v330
    %v347 = vpack.c.b16 %v333, %v332
    %v348 = vpack.c.b16 %v335, %v334
    %v349 = vpack.c.b16 %v337, %v336
    %v350 = vpack.c.b16 %v339, %v338
    %v351 = vpack.c.b16 %v341, %v340
    %v352 = vpack.c.b16 %v343, %v342
    %v353 = vpack.c.b16 %v345, %v344
    %362 = vmatprep.subr.bf16.mxu0 0
    %363 = vmatpush1.bf16.msra.mxu0 %v346
    %364 = vmatprep.subr.bf16.mxu0 0
    %365 = vmatpush1.bf16.msra.mxu0 %v347
    %366 = vmatprep.subr.bf16.mxu0 0
    %367 = vmatpush1.bf16.msra.mxu0 %v348
    %368 = vmatprep.subr.bf16.mxu0 0
    %369 = vmatpush1.bf16.msra.mxu0 %v349
    %370 = vmatprep.subr.bf16.mxu0 0
    %371 = vmatpush1.bf16.msra.mxu0 %v350
    %372 = vmatprep.subr.bf16.mxu0 0
    %373 = vmatpush1.bf16.msra.mxu0 %v351
    %374 = vmatprep.subr.bf16.mxu0 0
    %375 = vmatpush1.bf16.msra.mxu0 %v352
    %376 = vmatprep.subr.bf16.mxu0 0
    %377 = vmatpush1.bf16.msra.mxu0 %v353
    %378 = vmatprep.subr.bf16.mxu0 0
    %379 = vmatpush1.bf16.msra.mxu0 0
    %380 = vmatprep.subr.bf16.mxu0 0
    %381 = vmatpush1.bf16.msra.mxu0 0
    %382 = vmatprep.subr.bf16.mxu0 0
    %383 = vmatpush1.bf16.msra.mxu0 0
    %384 = vmatprep.subr.bf16.mxu0 0
    %385 = vmatpush1.bf16.msra.mxu0 0
    %386 = vmatprep.subr.bf16.mxu0 0
    %387 = vmatpush1.bf16.msra.mxu0 0
    %388 = vmatprep.subr.bf16.mxu0 0
    %389 = vmatpush1.bf16.msra.mxu0 0
    %390 = vmatprep.subr.bf16.mxu0 0
    %391 = vmatpush1.bf16.msra.mxu0 0
    %392 = vmatprep.subr.bf16.mxu0 0
    %393 = vmatpush1.bf16.msra.mxu0 0
    %394 = vmatprep.mubr.bf16.mxu0 0
    %395 = vmatmul.mubr.bf16.gmra.mrb[0].mxu0 %v290
    %v396 = vpop.f32.mrb[0].mxu0
    %v397 = vadd.f32 %v312, %v396
    %v398 = vpop.f32.mrb[0].mxu0
    %v399 = vpop.f32.mrb[0].mxu0
    %v400 = vadd.f32 %v312, %v399
    %v401 = vpop.f32.mrb[0].mxu0
    %402 = vdwg.mxu0
    %v403 = vpack.c.bf16 %v400, %v397
    %v404 = vld [vmem:[#allocation11] sm:$0xf]
    %v405 = vld [vmem:[#allocation11 + $0x4] sm:$0xf]
    %v406 = vld [vmem:[#allocation11 + $0x8] sm:$0xf]
    %v407 = vld [vmem:[#allocation11 + $0xc] sm:$0xf]
    %v408 = vld [vmem:[#allocation11 + $0x10] sm:$0xf]
    %v409 = vld [vmem:[#allocation11 + $0x14] sm:$0xf]
    %v410 = vld [vmem:[#allocation11 + $0x18] sm:$0xf]
    %v411 = vld [vmem:[#allocation11 + $0x1c] sm:$0xf]
    %v412 = vld [vmem:[#allocation11 + $0x20] sm:$0xf]
    %v413 = vld [vmem:[#allocation11 + $0x24] sm:$0xf]
    %v414 = vld [vmem:[#allocation11 + $0x28] sm:$0xf]
    %v415 = vld [vmem:[#allocation11 + $0x2c] sm:$0xf]
    %v416 = vld [vmem:[#allocation11 + $0x30] sm:$0xf]
    %v417 = vld [vmem:[#allocation11 + $0x34] sm:$0xf]
    %v418 = vld [vmem:[#allocation11 + $0x38] sm:$0xf]
    %v419 = vld [vmem:[#allocation11 + $0x3c] sm:$0xf]
    %v420 = vld [vmem:[#allocation13] sm:$0x1]
    %v422 = vlaneseq
    %v423 = vshrl.u32 %v422, 7
    %v424 = vsub.s32 0, %v423
    %v425 = vrot.slane %v420, %v424
    %v443 = vunpack.c.l.b16 %v404
    %v444 = vunpack.c.l.b16 %v405
    %v445 = vunpack.c.l.b16 %v406
    %v446 = vunpack.c.l.b16 %v407
    %v447 = vunpack.c.l.b16 %v408
    %v448 = vunpack.c.l.b16 %v409
    %v449 = vunpack.c.l.b16 %v410
    %v450 = vunpack.c.l.b16 %v411
    %v451 = vunpack.c.l.b16 %v412
    %v452 = vunpack.c.l.b16 %v413
    %v453 = vunpack.c.l.b16 %v414
    %v454 = vunpack.c.l.b16 %v415
    %v455 = vunpack.c.l.b16 %v416
    %v456 = vunpack.c.l.b16 %v417
    %v457 = vunpack.c.l.b16 %v418
    %v458 = vunpack.c.l.b16 %v419
    %v459 = vpack.c.b16 %v444, %v443
    %v460 = vpack.c.b16 %v446, %v445
    %v461 = vpack.c.b16 %v448, %v447
    %v462 = vpack.c.b16 %v450, %v449
    %v463 = vpack.c.b16 %v452, %v451
    %v464 = vpack.c.b16 %v454, %v453
    %v465 = vpack.c.b16 %v456, %v455
    %v466 = vpack.c.b16 %v458, %v457
    %475 = vmatprep.subr.bf16.mxu0 0
    %476 = vmatpush1.bf16.msra.mxu0 %v459
    %477 = vmatprep.subr.bf16.mxu0 0
    %478 = vmatpush1.bf16.msra.mxu0 %v460
    %479 = vmatprep.subr.bf16.mxu0 0
    %480 = vmatpush1.bf16.msra.mxu0 %v461
    %481 = vmatprep.subr.bf16.mxu0 0
    %482 = vmatpush1.bf16.msra.mxu0 %v462
    %483 = vmatprep.subr.bf16.mxu0 0
    %484 = vmatpush1.bf16.msra.mxu0 %v463
    %485 = vmatprep.subr.bf16.mxu0 0
    %486 = vmatpush1.bf16.msra.mxu0 %v464
    %487 = vmatprep.subr.bf16.mxu0 0
    %488 = vmatpush1.bf16.msra.mxu0 %v465
    %489 = vmatprep.subr.bf16.mxu0 0
    %490 = vmatpush1.bf16.msra.mxu0 %v466
    %491 = vmatprep.subr.bf16.mxu0 0
    %492 = vmatpush1.bf16.msra.mxu0 0
    %493 = vmatprep.subr.bf16.mxu0 0
    %494 = vmatpush1.bf16.msra.mxu0 0
    %495 = vmatprep.subr.bf16.mxu0 0
    %496 = vmatpush1.bf16.msra.mxu0 0
    %497 = vmatprep.subr.bf16.mxu0 0
    %498 = vmatpush1.bf16.msra.mxu0 0
    %499 = vmatprep.subr.bf16.mxu0 0
    %500 = vmatpush1.bf16.msra.mxu0 0
    %501 = vmatprep.subr.bf16.mxu0 0
    %502 = vmatpush1.bf16.msra.mxu0 0
    %503 = vmatprep.subr.bf16.mxu0 0
    %504 = vmatpush1.bf16.msra.mxu0 0
    %505 = vmatprep.subr.bf16.mxu0 0
    %506 = vmatpush1.bf16.msra.mxu0 0
    %507 = vmatprep.mubr.bf16.mxu0 0
    %508 = vmatmul.mubr.bf16.gmra.mrb[0].mxu0 %v403
    %v509 = vpop.f32.mrb[0].mxu0
    %v510 = vadd.f32 %v425, %v509
    %v511 = vpop.f32.mrb[0].mxu0
    %v512 = vpop.f32.mrb[0].mxu0
    %v513 = vadd.f32 %v425, %v512
    %v514 = vpop.f32.mrb[0].mxu0
    %515 = vdwg.mxu0
    %v516 = vmax.f32 %v510, 0.0
    %v517 = vmax.f32 %v513, 0.0
    %v518 = vpack.c.bf16 %v517, %v516
    %v519 = vld [vmem:[#allocation14] sm:$0xf]
    %v520 = vld [vmem:[#allocation14 + $0x4] sm:$0xf]
    %v521 = vld [vmem:[#allocation14 + $0x8] sm:$0xf]
    %v522 = vld [vmem:[#allocation14 + $0xc] sm:$0xf]
    %v523 = vld [vmem:[#allocation14 + $0x10] sm:$0xf]
    %v524 = vld [vmem:[#allocation14 + $0x14] sm:$0xf]
    %v525 = vld [vmem:[#allocation14 + $0x18] sm:$0xf]
    %v526 = vld [vmem:[#allocation14 + $0x1c] sm:$0xf]
    %v527 = vld [vmem:[#allocation14 + $0x20] sm:$0xf]
    %v528 = vld [vmem:[#allocation14 + $0x24] sm:$0xf]
    %v529 = vld [vmem:[#allocation14 + $0x28] sm:$0xf]
    %v530 = vld [vmem:[#allocation14 + $0x2c] sm:$0xf]
    %v531 = vld [vmem:[#allocation14 + $0x30] sm:$0xf]
    %v532 = vld [vmem:[#allocation14 + $0x34] sm:$0xf]
    %v533 = vld [vmem:[#allocation14 + $0x38] sm:$0xf]
    %v534 = vld [vmem:[#allocation14 + $0x3c] sm:$0xf]
    %v535 = vld [vmem:[#allocation16] sm:$0x1]
    %v537 = vlaneseq
    %v538 = vshrl.u32 %v537, 7
    %v539 = vsub.s32 0, %v538
    %v540 = vrot.slane %v535, %v539
    %v558 = vunpack.c.l.b16 %v519
    %v559 = vunpack.c.l.b16 %v520
    %v560 = vunpack.c.l.b16 %v521
    %v561 = vunpack.c.l.b16 %v522
    %v562 = vunpack.c.l.b16 %v523
    %v563 = vunpack.c.l.b16 %v524
    %v564 = vunpack.c.l.b16 %v525
    %v565 = vunpack.c.l.b16 %v526
    %v566 = vunpack.c.l.b16 %v527
    %v567 = vunpack.c.l.b16 %v528
    %v568 = vunpack.c.l.b16 %v529
    %v569 = vunpack.c.l.b16 %v530
    %v570 = vunpack.c.l.b16 %v531
    %v571 = vunpack.c.l.b16 %v532
    %v572 = vunpack.c.l.b16 %v533
    %v573 = vunpack.c.l.b16 %v534
    %v574 = vpack.c.b16 %v559, %v558
    %v575 = vpack.c.b16 %v561, %v560
    %v576 = vpack.c.b16 %v563, %v562
    %v577 = vpack.c.b16 %v565, %v564
    %v578 = vpack.c.b16 %v567, %v566
    %v579 = vpack.c.b16 %v569, %v568
    %v580 = vpack.c.b16 %v571, %v570
    %v581 = vpack.c.b16 %v573, %v572
    %590 = vmatprep.subr.bf16.mxu0 0
    %591 = vmatpush1.bf16.msra.mxu0 %v574
    %592 = vmatprep.subr.bf16.mxu0 0
    %593 = vmatpush1.bf16.msra.mxu0 %v575
    %594 = vmatprep.subr.bf16.mxu0 0
    %595 = vmatpush1.bf16.msra.mxu0 %v576
    %596 = vmatprep.subr.bf16.mxu0 0
    %597 = vmatpush1.bf16.msra.mxu0 %v577
    %598 = vmatprep.subr.bf16.mxu0 0
    %599 = vmatpush1.bf16.msra.mxu0 %v578
    %600 = vmatprep.subr.bf16.mxu0 0
    %601 = vmatpush1.bf16.msra.mxu0 %v579
    %602 = vmatprep.subr.bf16.mxu0 0
    %603 = vmatpush1.bf16.msra.mxu0 %v580
    %604 = vmatprep.subr.bf16.mxu0 0
    %605 = vmatpush1.bf16.msra.mxu0 %v581
    %606 = vmatprep.subr.bf16.mxu0 0
    %607 = vmatpush1.bf16.msra.mxu0 0
    %608 = vmatprep.subr.bf16.mxu0 0
    %609 = vmatpush1.bf16.msra.mxu0 0
    %610 = vmatprep.subr.bf16.mxu0 0
    %611 = vmatpush1.bf16.msra.mxu0 0
    %612 = vmatprep.subr.bf16.mxu0 0
    %613 = vmatpush1.bf16.msra.mxu0 0
    %614 = vmatprep.subr.bf16.mxu0 0
    %615 = vmatpush1.bf16.msra.mxu0 0
    %616 = vmatprep.subr.bf16.mxu0 0
    %617 = vmatpush1.bf16.msra.mxu0 0
    %618 = vmatprep.subr.bf16.mxu0 0
    %619 = vmatpush1.bf16.msra.mxu0 0
    %620 = vmatprep.subr.bf16.mxu0 0
    %621 = vmatpush1.bf16.msra.mxu0 0
    %622 = vmatprep.mubr.bf16.mxu0 0
    %623 = vmatmul.mubr.bf16.gmra.mrb[0].mxu0 %v518
    %v624 = vpop.f32.mrb[0].mxu0
    %v625 = vadd.f32 %v540, %v624
    %v626 = vpop.f32.mrb[0].mxu0
    %v627 = vpop.f32.mrb[0].mxu0
    %v628 = vadd.f32 %v540, %v627
    %v629 = vpop.f32.mrb[0].mxu0
    %630 = vdwg.mxu0
    %v631 = vpack.c.bf16 %v628, %v625
    %v632 = vld [vmem:[#allocation17] sm:$0xf]
    %v633 = vld [vmem:[#allocation17 + $0x4] sm:$0xf]
    %v634 = vld [vmem:[#allocation17 + $0x8] sm:$0xf]
    %v635 = vld [vmem:[#allocation17 + $0xc] sm:$0xf]
    %v636 = vld [vmem:[#allocation17 + $0x10] sm:$0xf]
    %v637 = vld [vmem:[#allocation17 + $0x14] sm:$0xf]
    %v638 = vld [vmem:[#allocation17 + $0x18] sm:$0xf]
    %v639 = vld [vmem:[#allocation17 + $0x1c] sm:$0xf]
    %v640 = vld [vmem:[#allocation17 + $0x20] sm:$0xf]
    %v641 = vld [vmem:[#allocation17 + $0x24] sm:$0xf]
    %v642 = vld [vmem:[#allocation17 + $0x28] sm:$0xf]
    %v643 = vld [vmem:[#allocation17 + $0x2c] sm:$0xf]
    %v644 = vld [vmem:[#allocation17 + $0x30] sm:$0xf]
    %v645 = vld [vmem:[#allocation17 + $0x34] sm:$0xf]
    %v646 = vld [vmem:[#allocation17 + $0x38] sm:$0xf]
    %v647 = vld [vmem:[#allocation17 + $0x3c] sm:$0xf]
    %v664 = vunpack.c.l.b16 %v632
    %v665 = vunpack.c.l.b16 %v633
    %v666 = vunpack.c.l.b16 %v634
    %v667 = vunpack.c.l.b16 %v635
    %v668 = vunpack.c.l.b16 %v636
    %v669 = vunpack.c.l.b16 %v637
    %v670 = vunpack.c.l.b16 %v638
    %v671 = vunpack.c.l.b16 %v639
    %v672 = vunpack.c.l.b16 %v640
    %v673 = vunpack.c.l.b16 %v641
    %v674 = vunpack.c.l.b16 %v642
    %v675 = vunpack.c.l.b16 %v643
    %v676 = vunpack.c.l.b16 %v644
    %v677 = vunpack.c.l.b16 %v645
    %v678 = vunpack.c.l.b16 %v646
    %v679 = vunpack.c.l.b16 %v647
    %v680 = vpack.c.b16 %v665, %v664
    %v681 = vpack.c.b16 %v667, %v666
    %v682 = vpack.c.b16 %v669, %v668
    %v683 = vpack.c.b16 %v671, %v670
    %v684 = vpack.c.b16 %v673, %v672
    %v685 = vpack.c.b16 %v675, %v674
    %v686 = vpack.c.b16 %v677, %v676
    %v687 = vpack.c.b16 %v679, %v678
    %696 = vmatprep.subr.bf16.mxu0 0
    %697 = vmatpush1.bf16.msra.mxu0 %v680
    %698 = vmatprep.subr.bf16.mxu0 0
    %699 = vmatpush1.bf16.msra.mxu0 %v681
    %700 = vmatprep.subr.bf16.mxu0 0
    %701 = vmatpush1.bf16.msra.mxu0 %v682
    %702 = vmatprep.subr.bf16.mxu0 0
    %703 = vmatpush1.bf16.msra.mxu0 %v683
    %704 = vmatprep.subr.bf16.mxu0 0
    %705 = vmatpush1.bf16.msra.mxu0 %v684
    %706 = vmatprep.subr.bf16.mxu0 0
    %707 = vmatpush1.bf16.msra.mxu0 %v685
    %708 = vmatprep.subr.bf16.mxu0 0
    %709 = vmatpush1.bf16.msra.mxu0 %v686
    %710 = vmatprep.subr.bf16.mxu0 0
    %711 = vmatpush1.bf16.msra.mxu0 %v687
    %712 = vmatprep.subr.bf16.mxu0 0
    %713 = vmatpush1.bf16.msra.mxu0 0
    %714 = vmatprep.subr.bf16.mxu0 0
    %715 = vmatpush1.bf16.msra.mxu0 0
    %716 = vmatprep.subr.bf16.mxu0 0
    %717 = vmatpush1.bf16.msra.mxu0 0
    %718 = vmatprep.subr.bf16.mxu0 0
    %719 = vmatpush1.bf16.msra.mxu0 0
    %720 = vmatprep.subr.bf16.mxu0 0
    %721 = vmatpush1.bf16.msra.mxu0 0
    %722 = vmatprep.subr.bf16.mxu0 0
    %723 = vmatpush1.bf16.msra.mxu0 0
    %724 = vmatprep.subr.bf16.mxu0 0
    %725 = vmatpush1.bf16.msra.mxu0 0
    %726 = vmatprep.subr.bf16.mxu0 0
    %727 = vmatpush1.bf16.msra.mxu0 0
    %728 = vmatprep.mubr.bf16.mxu0 0
    %729 = vmatmul.mubr.bf16.gmra.mrb[0].mxu0 %v631
    %v730 = vpop.f32.mrb[0].mxu0
    %v731 = vadd.f32 0.0, %v730
    %v732 = vpop.f32.mrb[0].mxu0
    %v733 = vpop.f32.mrb[0].mxu0
    %v734 = vadd.f32 0.0, %v733
    %v735 = vpop.f32.mrb[0].mxu0
    %736 = vdwg.mxu0
    %v738 = vunpack.c.l.b16 %v631
    %v739 = vunpack.c.h.b16 %v631
    %v740 = vpack.c.b16 %v738, %v738
    %v741 = vpack.c.b16 %v739, %v739
    %744 = vst [vmem:[#allocation19] sm:$0xf] %v740
    %745 = vst [vmem:[#allocation19 + $0x4] sm:$0xf] %v741
    %v746 = vpack.c.bf16 %v734, %v731
    %v748 = vunpack.c.l.b16 %v746
    %v749 = vunpack.c.h.b16 %v746
    %v750 = vpack.c.b16 %v748, %v748
    %v751 = vpack.c.b16 %v749, %v749
    %754 = vst [vmem:[#allocation20] sm:$0xf] %v750
    %755 = vst [vmem:[#allocation20 + $0x4] sm:$0xf] %v751
    // Predicated region
    $region82: #{tpu_custom_call.1} parent=1 // pred_check
      _
    $region83: #{tpu_custom_call.1} parent=1 // pred_check_branch
      %757 = sbr.rel (0) target = $region85
    $region84: #{tpu_custom_call.1} parent=1 // pred_region
      %s759 = ssub.s32 128, 128
      %760 = vsyncadd [#allocation4], %s759
      %s761 = sshll.u32 [#allocation19], 4
      %s762 = int_to_ptr.vmem [resolvable:$true] %s761
      %767 = dma.vmem_to_hbm [thread:$0]  %s762, 128, %s10, [#allocation4], 64, 64, 4
    $region85: #{tpu_custom_call.1} parent=1 // pred_fallthru
      _
    // Predicated region
    $region86: #{tpu_custom_call.1} parent=1 // pred_check
      _
    $region87: #{tpu_custom_call.1} parent=1 // pred_check_branch
      %769 = sbr.rel (0) target = $region89
    $region88: #{tpu_custom_call.1} parent=1 // pred_region
      %s771 = ssub.s32 128, 128
      %772 = vsyncadd [#allocation21], %s771
      %s773 = sshll.u32 [#allocation20], 4
      %s774 = int_to_ptr.vmem [resolvable:$true] %s773
      %779 = dma.vmem_to_hbm [thread:$0]  %s774, 128, %s11, [#allocation21], 64, 64, 4
    $region89: #{tpu_custom_call.1} parent=1 // pred_fallthru
      _
    // Predicated region
    $region90: #{tpu_custom_call.1} parent=1 // pred_check
      _
    $region91: #{tpu_custom_call.1} parent=1 // pred_check_branch
      %781 = sbr.rel (0) target = $region93
    $region92: #{tpu_custom_call.1} parent=1 // pred_region
      %782 = dma.done [#allocation4], 128
    $region93: #{tpu_custom_call.1} parent=1 // pred_fallthru
      _
    // Predicated region
    $region94: #{tpu_custom_call.1} parent=1 // pred_check
      _
    $region95: #{tpu_custom_call.1} parent=1 // pred_check_branch
      %784 = sbr.rel (0) target = $region97
    $region96: #{tpu_custom_call.1} parent=1 // pred_region
      %785 = dma.done [#allocation21], 128
    $region97: #{tpu_custom_call.1} parent=1 // pred_fallthru
      _
    %786 = vsyncpa [#allocation3], 1
    %787 = vsyncpa [#allocation6], 1
    %788 = vsyncpa [#allocation9], 1
    %789 = vsyncpa [#allocation12], 1
    %790 = vsyncpa [#allocation15], 1
    %791 = vsyncpa [#allocation18], 1
    %792 = vsyncpa [#allocation4], 1
    %793 = vsyncpa [#allocation21], 1

// kernel: tpu_custom_call.1
$region0: #{tpu_custom_call.1}
  #allocation0 [shape = 'u32[]', space=smem, size = 0x4, offset = 0x4, fixed_abs, tag = 'smem constant byte address 0x4 - core index']
  #allocation1 [shape = 'u32[144,128]{1,0:T(1,128)}', space=vmem, size = 0x12000, scoped, tag = 'internal scratch']
  %s0 = inlined_call_operand.hbm [shape: bf16[16,128], index: 0, kind: input, shape index: {}]
  %s1 = inlined_call_operand.hbm [shape: bf16[128,128], index: 1, kind: input, shape index: {}]
  %s2 = inlined_call_operand.hbm [shape: f32[1,128], index: 2, kind: input, shape index: {}]
  %s3 = inlined_call_operand.hbm [shape: bf16[128,128], index: 3, kind: input, shape index: {}]
  %s4 = inlined_call_operand.hbm [shape: f32[1,128], index: 4, kind: input, shape index: {}]
  %s5 = inlined_call_operand.hbm [shape: bf16[128,128], index: 5, kind: input, shape index: {}]
  %s6 = inlined_call_operand.hbm [shape: f32[1,128], index: 6, kind: input, shape index: {}]
  %s7 = inlined_call_operand.hbm [shape: bf16[128,128], index: 7, kind: input, shape index: {}]
  %s8 = inlined_call_operand.hbm [shape: f32[1,128], index: 8, kind: input, shape index: {}]
  %s9 = inlined_call_operand.hbm [shape: bf16[128,128], index: 9, kind: input, shape index: {}]
  %s10 = inlined_call_operand.hbm [shape: bf16[16,128], index: 10, kind: output, shape index: {0}]
  %s11 = inlined_call_operand.hbm [shape: bf16[16,128], index: 11, kind: output, shape index: {1}]
  %12 = xla_tuple %s10, %s11
  %s13 = sld [smem:[#allocation0]]
  $region98: #{tpu_custom_call.1} parent=0
    _
  %s15 = ssub.s32 1, %s13
  %s16 = scalar_select 0, %s15, %s13
  $region1: #{tpu_custom_call.1} parent=0
    #allocation2 [shape = 'u8[4096]{0}', space=vmem, size = 0x1000, scoped, tag = 'input window, operand 0, single buffered']
    #allocation3 [shape = 's32[1]{0}', space=sflag, size = 0x4, scoped, tag = 'scoped memory for tpu_custom_call.1']
    #allocation4 [shape = 's32[1]{0}', space=sflag, size = 0x4, scoped, tag = 'scoped memory for tpu_custom_call.1']
    #allocation5 [shape = 'u8[32768]{0}', space=vmem, size = 0x8000, scoped, tag = 'input window, operand 1, single buffered']
    #allocation6 [shape = 's32[1]{0}', space=sflag, size = 0x4, scoped, tag = 'scoped memory for tpu_custom_call.1']
    #allocation7 [shape = 'u8[512]{0}', space=vmem, size = 0x400, scoped, tag = 'input window, operand 2, single buffered']
    #allocation8 [shape = 'u8[32768]{0}', space=vmem, size = 0x8000, scoped, tag = 'input window, operand 3, single buffered']
    #allocation9 [shape = 's32[1]{0}', space=sflag, size = 0x4, scoped, tag = 'scoped memory for tpu_custom_call.1']
    #allocation10 [shape = 'u8[512]{0}', space=vmem, size = 0x400, scoped, tag = 'input window, operand 4, single buffered']
    #allocation11 [shape = 'u8[32768]{0}', space=vmem, size = 0x8000, scoped, tag = 'input window, operand 5, single buffered']
    #allocation12 [shape = 's32[1]{0}', space=sflag, size = 0x4, scoped, tag = 'scoped memory for tpu_custom_call.1']
    #allocation13 [shape = 'u8[512]{0}', space=vmem, size = 0x400, scoped, tag = 'input window, operand 6, single buffered']
    #allocation14 [shape = 'u8[32768]{0}', space=vmem, size = 0x8000, scoped, tag = 'input window, operand 7, single buffered']
    #allocation15 [shape = 's32[1]{0}', space=sflag, size = 0x4, scoped, tag = 'scoped memory for tpu_custom_call.1']
    #allocation16 [shape = 'u8[512]{0}', space=vmem, size = 0x400, scoped, tag = 'input window, operand 8, single buffered']
    #allocation17 [shape = 'u8[32768]{0}', space=vmem, size = 0x8000, scoped, tag = 'input window, operand 9, single buffered']
    #allocation18 [shape = 's32[1]{0}', space=sflag, size = 0x4, scoped, tag = 'scoped memory for tpu_custom_call.1']
    #allocation19 [shape = 'u8[4096]{0}', space=vmem, size = 0x1000, scoped, tag = 'output window, operand 0, single buffered']
    #allocation20 [shape = 'u8[4096]{0}', space=vmem, size = 0x1000, scoped, tag = 'output window, operand 1, single buffered']
    #allocation21 [shape = 's32[1]{0}', space=sflag, size = 0x4, scoped, tag = 'scoped memory for tpu_custom_call.1']
    %17 = vsyncpa [#allocation3], 0
    %18 = vsyncpa [#allocation6], 0
    %19 = vsyncpa [#allocation9], 0
    %20 = vsyncpa [#allocation12], 0
    %21 = vsyncpa [#allocation15], 0
    %22 = vsyncpa [#allocation18], 0
    %23 = vsyncpa [#allocation4], 0
    %24 = vsyncpa [#allocation21], 0
    // Predicated region
    $region2: #{tpu_custom_call.1} parent=1 // pred_check
      _
    $region3: #{tpu_custom_call.1} parent=1 // pred_check_branch
      %26 = sbr.rel (0) target = $region5
    $region4: #{tpu_custom_call.1} parent=1 // pred_region
      %s28 = ssub.s32 128, 128
      %29 = vsyncadd [#allocation3], %s28
      %s30 = sshll.u32 [#allocation2], 4
      %s31 = int_to_ptr.vmem [resolvable:$true] %s30
      %36 = dma.hbm_to_vmem [thread:$0]  %s0, 128, %s31, [#allocation3], 64, 64, 4
    $region5: #{tpu_custom_call.1} parent=1 // pred_fallthru
      _
    // Predicated region
    $region6: #{tpu_custom_call.1} parent=1 // pred_check
      _
    $region7: #{tpu_custom_call.1} parent=1 // pred_check_branch
      %38 = sbr.rel (0) target = $region9
    $region8: #{tpu_custom_call.1} parent=1 // pred_region
      %s40 = ssub.s32 1024, 1024
      %41 = vsyncadd [#allocation6], %s40
      %s42 = sshll.u32 [#allocation5], 4
      %s43 = int_to_ptr.vmem [resolvable:$true] %s42
      %48 = dma.hbm_to_vmem [thread:$0]  %s1, 1024, %s43, [#allocation6], 64, 64, 4
    $region9: #{tpu_custom_call.1} parent=1 // pred_fallthru
      _
    // Predicated region
    $region10: #{tpu_custom_call.1} parent=1 // pred_check
      _
    $region11: #{tpu_custom_call.1} parent=1 // pred_check_branch
      %50 = sbr.rel (0) target = $region13
    $region12: #{tpu_custom_call.1} parent=1 // pred_region
      %s52 = ssub.s32 16, 16
      %53 = vsyncadd [#allocation6], %s52
      %s55 = sshll.u32 [#allocation7], 4
      %s56 = int_to_ptr.vmem [resolvable:$true] %s55
      %58 = dma.hbm_to_vmem [thread:$0]  %s2, 16, %s56, [#allocation6]
    $region13: #{tpu_custom_call.1} parent=1 // pred_fallthru
      _
    // Predicated region
    $region14: #{tpu_custom_call.1} parent=1 // pred_check
      _
    $region15: #{tpu_custom_call.1} parent=1 // pred_check_branch
      %60 = sbr.rel (0) target = $region17
    $region16: #{tpu_custom_call.1} parent=1 // pred_region
      %s62 = ssub.s32 1024, 1024
      %63 = vsyncadd [#allocation9], %s62
      %s64 = sshll.u32 [#allocation8], 4
      %s65 = int_to_ptr.vmem [resolvable:$true] %s64
      %70 = dma.hbm_to_vmem [thread:$0]  %s3, 1024, %s65, [#allocation9], 64, 64, 4
    $region17: #{tpu_custom_call.1} parent=1 // pred_fallthru
      _
    // Predicated region
    $region18: #{tpu_custom_call.1} parent=1 // pred_check
      _
    $region19: #{tpu_custom_call.1} parent=1 // pred_check_branch
      %72 = sbr.rel (0) target = $region21
    $region20: #{tpu_custom_call.1} parent=1 // pred_region
      %s74 = ssub.s32 16, 16
      %75 = vsyncadd [#allocation9], %s74
      %s77 = sshll.u32 [#allocation10], 4
      %s78 = int_to_ptr.vmem [resolvable:$true] %s77
      %80 = dma.hbm_to_vmem [thread:$0]  %s4, 16, %s78, [#allocation9]
    $region21: #{tpu_custom_call.1} parent=1 // pred_fallthru
      _
    // Predicated region
    $region22: #{tpu_custom_call.1} parent=1 // pred_check
      _
    $region23: #{tpu_custom_call.1} parent=1 // pred_check_branch
      %82 = sbr.rel (0) target = $region25
    $region24: #{tpu_custom_call.1} parent=1 // pred_region
      %s84 = ssub.s32 1024, 1024
      %85 = vsyncadd [#allocation12], %s84
      %s86 = sshll.u32 [#allocation11], 4
      %s87 = int_to_ptr.vmem [resolvable:$true] %s86
      %92 = dma.hbm_to_vmem [thread:$0]  %s5, 1024, %s87, [#allocation12], 64, 64, 4
    $region25: #{tpu_custom_call.1} parent=1 // pred_fallthru
      _
    // Predicated region
    $region26: #{tpu_custom_call.1} parent=1 // pred_check
      _
    $region27: #{tpu_custom_call.1} parent=1 // pred_check_branch
      %94 = sbr.rel (0) target = $region29
    $region28: #{tpu_custom_call.1} parent=1 // pred_region
      %s96 = ssub.s32 16, 16
      %97 = vsyncadd [#allocation12], %s96
      %s99 = sshll.u32 [#allocation13], 4
      %s100 = int_to_ptr.vmem [resolvable:$true] %s99
      %102 = dma.hbm_to_vmem [thread:$0]  %s6, 16, %s100, [#allocation12]
    $region29: #{tpu_custom_call.1} parent=1 // pred_fallthru
      _
    // Predicated region
    $region30: #{tpu_custom_call.1} parent=1 // pred_check
      _
    $region31: #{tpu_custom_call.1} parent=1 // pred_check_branch
      %104 = sbr.rel (0) target = $region33
    $region32: #{tpu_custom_call.1} parent=1 // pred_region
      %s106 = ssub.s32 1024, 1024
      %107 = vsyncadd [#allocation15], %s106
      %s108 = sshll.u32 [#allocation14], 4
      %s109 = int_to_ptr.vmem [resolvable:$true] %s108
      %114 = dma.hbm_to_vmem [thread:$0]  %s7, 1024, %s109, [#allocation15], 64, 64, 4
    $region33: #{tpu_custom_call.1} parent=1 // pred_fallthru
      _
    // Predicated region
    $region34: #{tpu_custom_call.1} parent=1 // pred_check
      _
    $region35: #{tpu_custom_call.1} parent=1 // pred_check_branch
      %116 = sbr.rel (0) target = $region37
    $region36: #{tpu_custom_call.1} parent=1 // pred_region
      %s118 = ssub.s32 16, 16
      %119 = vsyncadd [#allocation15], %s118
      %s121 = sshll.u32 [#allocation16], 4
      %s122 = int_to_ptr.vmem [resolvable:$true] %s121
      %124 = dma.hbm_to_vmem [thread:$0]  %s8, 16, %s122, [#allocation15]
    $region37: #{tpu_custom_call.1} parent=1 // pred_fallthru
      _
    // Predicated region
    $region38: #{tpu_custom_call.1} parent=1 // pred_check
      _
    $region39: #{tpu_custom_call.1} parent=1 // pred_check_branch
      %126 = sbr.rel (0) target = $region41
    $region40: #{tpu_custom_call.1} parent=1 // pred_region
      %s128 = ssub.s32 1024, 1024
      %129 = vsyncadd [#allocation18], %s128
      %s130 = sshll.u32 [#allocation17], 4
      %s131 = int_to_ptr.vmem [resolvable:$true] %s130
      %136 = dma.hbm_to_vmem [thread:$0]  %s9, 1024, %s131, [#allocation18], 64, 64, 4
    $region41: #{tpu_custom_call.1} parent=1 // pred_fallthru
      _
    // Predicated region
    $region42: #{tpu_custom_call.1} parent=1 // pred_check
      _
    $region43: #{tpu_custom_call.1} parent=1 // pred_check_branch
      %138 = sbr.rel (0) target = $region45
    $region44: #{tpu_custom_call.1} parent=1 // pred_region
      %139 = dma.done [#allocation3], 128
    $region45: #{tpu_custom_call.1} parent=1 // pred_fallthru
      _
    // Predicated region
    $region46: #{tpu_custom_call.1} parent=1 // pred_check
      _
    $region47: #{tpu_custom_call.1} parent=1 // pred_check_branch
      %141 = sbr.rel (0) target = $region49
    $region48: #{tpu_custom_call.1} parent=1 // pred_region
      %142 = dma.done [#allocation6], 1024
    $region49: #{tpu_custom_call.1} parent=1 // pred_fallthru
      _
    // Predicated region
    $region50: #{tpu_custom_call.1} parent=1 // pred_check
      _
    $region51: #{tpu_custom_call.1} parent=1 // pred_check_branch
      %144 = sbr.rel (0) target = $region53
    $region52: #{tpu_custom_call.1} parent=1 // pred_region
      %145 = dma.done [#allocation6], 16
    $region53: #{tpu_custom_call.1} parent=1 // pred_fallthru
      _
    // Predicated region
    $region54: #{tpu_custom_call.1} parent=1 // pred_check
      _
    $region55: #{tpu_custom_call.1} parent=1 // pred_check_branch
      %147 = sbr.rel (0) target = $region57
    $region56: #{tpu_custom_call.1} parent=1 // pred_region
      %148 = dma.done [#allocation9], 1024
    $region57: #{tpu_custom_call.1} parent=1 // pred_fallthru
      _
    // Predicated region
    $region58: #{tpu_custom_call.1} parent=1 // pred_check
      _
    $region59: #{tpu_custom_call.1} parent=1 // pred_check_branch
      %150 = sbr.rel (0) target = $region61
    $region60: #{tpu_custom_call.1} parent=1 // pred_region
      %151 = dma.done [#allocation9], 16
    $region61: #{tpu_custom_call.1} parent=1 // pred_fallthru
      _
    // Predicated region
    $region62: #{tpu_custom_call.1} parent=1 // pred_check
      _
    $region63: #{tpu_custom_call.1} parent=1 // pred_check_branch
      %153 = sbr.rel (0) target = $region65
    $region64: #{tpu_custom_call.1} parent=1 // pred_region
      %154 = dma.done [#allocation12], 1024
    $region65: #{tpu_custom_call.1} parent=1 // pred_fallthru
      _
    // Predicated region
    $region66: #{tpu_custom_call.1} parent=1 // pred_check
      _
    $region67: #{tpu_custom_call.1} parent=1 // pred_check_branch
      %156 = sbr.rel (0) target = $region69
    $region68: #{tpu_custom_call.1} parent=1 // pred_region
      %157 = dma.done [#allocation12], 16
    $region69: #{tpu_custom_call.1} parent=1 // pred_fallthru
      _
    // Predicated region
    $region70: #{tpu_custom_call.1} parent=1 // pred_check
      _
    $region71: #{tpu_custom_call.1} parent=1 // pred_check_branch
      %159 = sbr.rel (0) target = $region73
    $region72: #{tpu_custom_call.1} parent=1 // pred_region
      %160 = dma.done [#allocation15], 1024
    $region73: #{tpu_custom_call.1} parent=1 // pred_fallthru
      _
    // Predicated region
    $region74: #{tpu_custom_call.1} parent=1 // pred_check
      _
    $region75: #{tpu_custom_call.1} parent=1 // pred_check_branch
      %162 = sbr.rel (0) target = $region77
    $region76: #{tpu_custom_call.1} parent=1 // pred_region
      %163 = dma.done [#allocation15], 16
    $region77: #{tpu_custom_call.1} parent=1 // pred_fallthru
      _
    // Predicated region
    $region78: #{tpu_custom_call.1} parent=1 // pred_check
      _
    $region79: #{tpu_custom_call.1} parent=1 // pred_check_branch
      %165 = sbr.rel (0) target = $region81
    $region80: #{tpu_custom_call.1} parent=1 // pred_region
      %166 = dma.done [#allocation18], 1024
    $region81: #{tpu_custom_call.1} parent=1 // pred_fallthru
      _
    %v168 = vld [vmem:[#allocation2] sm:$0xf]
    %v169 = vld [vmem:[#allocation2 + $0x4] sm:$0xf]
    %v170 = vld [vmem:[#allocation5] sm:$0xf]
    %v171 = vld [vmem:[#allocation5 + $0x4] sm:$0xf]
    %v172 = vld [vmem:[#allocation5 + $0x8] sm:$0xf]
    %v173 = vld [vmem:[#allocation5 + $0xc] sm:$0xf]
    %v174 = vld [vmem:[#allocation5 + $0x10] sm:$0xf]
    %v175 = vld [vmem:[#allocation5 + $0x14] sm:$0xf]
    %v176 = vld [vmem:[#allocation5 + $0x18] sm:$0xf]
    %v177 = vld [vmem:[#allocation5 + $0x1c] sm:$0xf]
    %v178 = vld [vmem:[#allocation5 + $0x20] sm:$0xf]
    %v179 = vld [vmem:[#allocation5 + $0x24] sm:$0xf]
    %v180 = vld [vmem:[#allocation5 + $0x28] sm:$0xf]
    %v181 = vld [vmem:[#allocation5 + $0x2c] sm:$0xf]
    %v182 = vld [vmem:[#allocation5 + $0x30] sm:$0xf]
    %v183 = vld [vmem:[#allocation5 + $0x34] sm:$0xf]
    %v184 = vld [vmem:[#allocation5 + $0x38] sm:$0xf]
    %v185 = vld [vmem:[#allocation5 + $0x3c] sm:$0xf]
    %v186 = vld [vmem:[#allocation7] sm:$0x1]
    %v188 = vlaneseq
    %v189 = vshrl.u32 %v188, 7
    %v190 = vsub.s32 0, %v189
    %v191 = vrot.slane %v186, %v190
    %v195 = vunpack.c.l.b16 %v168
    %v196 = vunpack.c.l.b16 %v169
    %v197 = vpack.c.b16 %v196, %v195
    %v215 = vunpack.c.l.b16 %v170
    %v216 = vunpack.c.l.b16 %v171
    %v217 = vunpack.c.l.b16 %v172
    %v218 = vunpack.c.l.b16 %v173
    %v219 = vunpack.c.l.b16 %v174
    %v220 = vunpack.c.l.b16 %v175
    %v221 = vunpack.c.l.b16 %v176
    %v222 = vunpack.c.l.b16 %v177
    %v223 = vunpack.c.l.b16 %v178
    %v224 = vunpack.c.l.b16 %v179
    %v225 = vunpack.c.l.b16 %v180
    %v226 = vunpack.c.l.b16 %v181
    %v227 = vunpack.c.l.b16 %v182
    %v228 = vunpack.c.l.b16 %v183
    %v229 = vunpack.c.l.b16 %v184
    %v230 = vunpack.c.l.b16 %v185
    %v231 = vpack.c.b16 %v216, %v215
    %v232 = vpack.c.b16 %v218, %v217
    %v233 = vpack.c.b16 %v220, %v219
    %v234 = vpack.c.b16 %v222, %v221
    %v235 = vpack.c.b16 %v224, %v223
    %v236 = vpack.c.b16 %v226, %v225
    %v237 = vpack.c.b16 %v228, %v227
    %v238 = vpack.c.b16 %v230, %v229
    %247 = vmatprep.subr.bf16.mxu0 0
    %248 = vmatpush1.bf16.msra.mxu0 %v231
    %249 = vmatprep.subr.bf16.mxu0 0
    %250 = vmatpush1.bf16.msra.mxu0 %v232
    %251 = vmatprep.subr.bf16.mxu0 0
    %252 = vmatpush1.bf16.msra.mxu0 %v233
    %253 = vmatprep.subr.bf16.mxu0 0
    %254 = vmatpush1.bf16.msra.mxu0 %v234
    %255 = vmatprep.subr.bf16.mxu0 0
    %256 = vmatpush1.bf16.msra.mxu0 %v235
    %257 = vmatprep.subr.bf16.mxu0 0
    %258 = vmatpush1.bf16.msra.mxu0 %v236
    %259 = vmatprep.subr.bf16.mxu0 0
    %260 = vmatpush1.bf16.msra.mxu0 %v237
    %261 = vmatprep.subr.bf16.mxu0 0
    %262 = vmatpush1.bf16.msra.mxu0 %v238
    %263 = vmatprep.subr.bf16.mxu0 0
    %264 = vmatpush1.bf16.msra.mxu0 0
    %265 = vmatprep.subr.bf16.mxu0 0
    %266 = vmatpush1.bf16.msra.mxu0 0
    %267 = vmatprep.subr.bf16.mxu0 0
    %268 = vmatpush1.bf16.msra.mxu0 0
    %269 = vmatprep.subr.bf16.mxu0 0
    %270 = vmatpush1.bf16.msra.mxu0 0
    %271 = vmatprep.subr.bf16.mxu0 0
    %272 = vmatpush1.bf16.msra.mxu0 0
    %273 = vmatprep.subr.bf16.mxu0 0
    %274 = vmatpush1.bf16.msra.mxu0 0
    %275 = vmatprep.subr.bf16.mxu0 0
    %276 = vmatpush1.bf16.msra.mxu0 0
    %277 = vmatprep.subr.bf16.mxu0 0
    %278 = vmatpush1.bf16.msra.mxu0 0
    %279 = vmatprep.mubr.bf16.mxu0 0
    %280 = vmatmul.mubr.bf16.gmra.mrb[0].mxu0 %v197
    %v281 = vpop.f32.mrb[0].mxu0
    %v282 = vadd.f32 %v191, %v281
    %v283 = vpop.f32.mrb[0].mxu0
    %v284 = vpop.f32.mrb[0].mxu0
    %v285 = vadd.f32 %v191, %v284
    %v286 = vpop.f32.mrb[0].mxu0
    %287 = vdwg.mxu0
    %v288 = vmax.f32 %v282, 0.0
    %v289 = vmax.f32 %v285, 0.0
    %v290 = vpack.c.bf16 %v289, %v288
    %v291 = vld [vmem:[#allocation8] sm:$0xf]
    %v292 = vld [vmem:[#allocation8 + $0x4] sm:$0xf]
    %v293 = vld [vmem:[#allocation8 + $0x8] sm:$0xf]
    %v294 = vld [vmem:[#allocation8 + $0xc] sm:$0xf]
    %v295 = vld [vmem:[#allocation8 + $0x10] sm:$0xf]
    %v296 = vld [vmem:[#allocation8 + $0x14] sm:$0xf]
    %v297 = vld [vmem:[#allocation8 + $0x18] sm:$0xf]
    %v298 = vld [vmem:[#allocation8 + $0x1c] sm:$0xf]
    %v299 = vld [vmem:[#allocation8 + $0x20] sm:$0xf]
    %v300 = vld [vmem:[#allocation8 + $0x24] sm:$0xf]
    %v301 = vld [vmem:[#allocation8 + $0x28] sm:$0xf]
    %v302 = vld [vmem:[#allocation8 + $0x2c] sm:$0xf]
    %v303 = vld [vmem:[#allocation8 + $0x30] sm:$0xf]
    %v304 = vld [vmem:[#allocation8 + $0x34] sm:$0xf]
    %v305 = vld [vmem:[#allocation8 + $0x38] sm:$0xf]
    %v306 = vld [vmem:[#allocation8 + $0x3c] sm:$0xf]
    %v307 = vld [vmem:[#allocation10] sm:$0x1]
    %v309 = vlaneseq
    %v310 = vshrl.u32 %v309, 7
    %v311 = vsub.s32 0, %v310
    %v312 = vrot.slane %v307, %v311
    %v330 = vunpack.c.l.b16 %v291
    %v331 = vunpack.c.l.b16 %v292
    %v332 = vunpack.c.l.b16 %v293
    %v333 = vunpack.c.l.b16 %v294
    %v334 = vunpack.c.l.b16 %v295
    %v335 = vunpack.c.l.b16 %v296
    %v336 = vunpack.c.l.b16 %v297
    %v337 = vunpack.c.l.b16 %v298
    %v338 = vunpack.c.l.b16 %v299
    %v339 = vunpack.c.l.b16 %v300
    %v340 = vunpack.c.l.b16 %v301
    %v341 = vunpack.c.l.b16 %v302
    %v342 = vunpack.c.l.b16 %v303
    %v343 = vunpack.c.l.b16 %v304
    %v344 = vunpack.c.l.b16 %v305
    %v345 = vunpack.c.l.b16 %v306
    %v346 = vpack.c.b16 %v331, %v330
    %v347 = vpack.c.b16 %v333, %v332
    %v348 = vpack.c.b16 %v335, %v334
    %v349 = vpack.c.b16 %v337, %v336
    %v350 = vpack.c.b16 %v339, %v338
    %v351 = vpack.c.b16 %v341, %v340
    %v352 = vpack.c.b16 %v343, %v342
    %v353 = vpack.c.b16 %v345, %v344
    %362 = vmatprep.subr.bf16.mxu0 0
    %363 = vmatpush1.bf16.msra.mxu0 %v346
    %364 = vmatprep.subr.bf16.mxu0 0
    %365 = vmatpush1.bf16.msra.mxu0 %v347
    %366 = vmatprep.subr.bf16.mxu0 0
    %367 = vmatpush1.bf16.msra.mxu0 %v348
    %368 = vmatprep.subr.bf16.mxu0 0
    %369 = vmatpush1.bf16.msra.mxu0 %v349
    %370 = vmatprep.subr.bf16.mxu0 0
    %371 = vmatpush1.bf16.msra.mxu0 %v350
    %372 = vmatprep.subr.bf16.mxu0 0
    %373 = vmatpush1.bf16.msra.mxu0 %v351
    %374 = vmatprep.subr.bf16.mxu0 0
    %375 = vmatpush1.bf16.msra.mxu0 %v352
    %376 = vmatprep.subr.bf16.mxu0 0
    %377 = vmatpush1.bf16.msra.mxu0 %v353
    %378 = vmatprep.subr.bf16.mxu0 0
    %379 = vmatpush1.bf16.msra.mxu0 0
    %380 = vmatprep.subr.bf16.mxu0 0
    %381 = vmatpush1.bf16.msra.mxu0 0
    %382 = vmatprep.subr.bf16.mxu0 0
    %383 = vmatpush1.bf16.msra.mxu0 0
    %384 = vmatprep.subr.bf16.mxu0 0
    %385 = vmatpush1.bf16.msra.mxu0 0
    %386 = vmatprep.subr.bf16.mxu0 0
    %387 = vmatpush1.bf16.msra.mxu0 0
    %388 = vmatprep.subr.bf16.mxu0 0
    %389 = vmatpush1.bf16.msra.mxu0 0
    %390 = vmatprep.subr.bf16.mxu0 0
    %391 = vmatpush1.bf16.msra.mxu0 0
    %392 = vmatprep.subr.bf16.mxu0 0
    %393 = vmatpush1.bf16.msra.mxu0 0
    %394 = vmatprep.mubr.bf16.mxu0 0
    %395 = vmatmul.mubr.bf16.gmra.mrb[0].mxu0 %v290
    %v396 = vpop.f32.mrb[0].mxu0
    %v397 = vadd.f32 %v312, %v396
    %v398 = vpop.f32.mrb[0].mxu0
    %v399 = vpop.f32.mrb[0].mxu0
    %v400 = vadd.f32 %v312, %v399
    %v401 = vpop.f32.mrb[0].mxu0
    %402 = vdwg.mxu0
    %v403 = vpack.c.bf16 %v400, %v397
    %v404 = vld [vmem:[#allocation11] sm:$0xf]
    %v405 = vld [vmem:[#allocation11 + $0x4] sm:$0xf]
    %v406 = vld [vmem:[#allocation11 + $0x8] sm:$0xf]
    %v407 = vld [vmem:[#allocation11 + $0xc] sm:$0xf]
    %v408 = vld [vmem:[#allocation11 + $0x10] sm:$0xf]
    %v409 = vld [vmem:[#allocation11 + $0x14] sm:$0xf]
    %v410 = vld [vmem:[#allocation11 + $0x18] sm:$0xf]
    %v411 = vld [vmem:[#allocation11 + $0x1c] sm:$0xf]
    %v412 = vld [vmem:[#allocation11 + $0x20] sm:$0xf]
    %v413 = vld [vmem:[#allocation11 + $0x24] sm:$0xf]
    %v414 = vld [vmem:[#allocation11 + $0x28] sm:$0xf]
    %v415 = vld [vmem:[#allocation11 + $0x2c] sm:$0xf]
    %v416 = vld [vmem:[#allocation11 + $0x30] sm:$0xf]
    %v417 = vld [vmem:[#allocation11 + $0x34] sm:$0xf]
    %v418 = vld [vmem:[#allocation11 + $0x38] sm:$0xf]
    %v419 = vld [vmem:[#allocation11 + $0x3c] sm:$0xf]
    %v420 = vld [vmem:[#allocation13] sm:$0x1]
    %v422 = vlaneseq
    %v423 = vshrl.u32 %v422, 7
    %v424 = vsub.s32 0, %v423
    %v425 = vrot.slane %v420, %v424
    %v443 = vunpack.c.l.b16 %v404
    %v444 = vunpack.c.l.b16 %v405
    %v445 = vunpack.c.l.b16 %v406
    %v446 = vunpack.c.l.b16 %v407
    %v447 = vunpack.c.l.b16 %v408
    %v448 = vunpack.c.l.b16 %v409
    %v449 = vunpack.c.l.b16 %v410
    %v450 = vunpack.c.l.b16 %v411
    %v451 = vunpack.c.l.b16 %v412
    %v452 = vunpack.c.l.b16 %v413
    %v453 = vunpack.c.l.b16 %v414
    %v454 = vunpack.c.l.b16 %v415
    %v455 = vunpack.c.l.b16 %v416
    %v456 = vunpack.c.l.b16 %v417
    %v457 = vunpack.c.l.b16 %v418
    %v458 = vunpack.c.l.b16 %v419
    %v459 = vpack.c.b16 %v444, %v443
    %v460 = vpack.c.b16 %v446, %v445
    %v461 = vpack.c.b16 %v448, %v447
    %v462 = vpack.c.b16 %v450, %v449
    %v463 = vpack.c.b16 %v452, %v451
    %v464 = vpack.c.b16 %v454, %v453
    %v465 = vpack.c.b16 %v456, %v455
    %v466 = vpack.c.b16 %v458, %v457
    %475 = vmatprep.subr.bf16.mxu0 0
    %476 = vmatpush1.bf16.msra.mxu0 %v459
    %477 = vmatprep.subr.bf16.mxu0 0
    %478 = vmatpush1.bf16.msra.mxu0 %v460
    %479 = vmatprep.subr.bf16.mxu0 0
    %480 = vmatpush1.bf16.msra.mxu0 %v461
    %481 = vmatprep.subr.bf16.mxu0 0
    %482 = vmatpush1.bf16.msra.mxu0 %v462
    %483 = vmatprep.subr.bf16.mxu0 0
    %484 = vmatpush1.bf16.msra.mxu0 %v463
    %485 = vmatprep.subr.bf16.mxu0 0
    %486 = vmatpush1.bf16.msra.mxu0 %v464
    %487 = vmatprep.subr.bf16.mxu0 0
    %488 = vmatpush1.bf16.msra.mxu0 %v465
    %489 = vmatprep.subr.bf16.mxu0 0
    %490 = vmatpush1.bf16.msra.mxu0 %v466
    %491 = vmatprep.subr.bf16.mxu0 0
    %492 = vmatpush1.bf16.msra.mxu0 0
    %493 = vmatprep.subr.bf16.mxu0 0
    %494 = vmatpush1.bf16.msra.mxu0 0
    %495 = vmatprep.subr.bf16.mxu0 0
    %496 = vmatpush1.bf16.msra.mxu0 0
    %497 = vmatprep.subr.bf16.mxu0 0
    %498 = vmatpush1.bf16.msra.mxu0 0
    %499 = vmatprep.subr.bf16.mxu0 0
    %500 = vmatpush1.bf16.msra.mxu0 0
    %501 = vmatprep.subr.bf16.mxu0 0
    %502 = vmatpush1.bf16.msra.mxu0 0
    %503 = vmatprep.subr.bf16.mxu0 0
    %504 = vmatpush1.bf16.msra.mxu0 0
    %505 = vmatprep.subr.bf16.mxu0 0
    %506 = vmatpush1.bf16.msra.mxu0 0
    %507 = vmatprep.mubr.bf16.mxu0 0
    %508 = vmatmul.mubr.bf16.gmra.mrb[0].mxu0 %v403
    %v509 = vpop.f32.mrb[0].mxu0
    %v510 = vadd.f32 %v425, %v509
    %v511 = vpop.f32.mrb[0].mxu0
    %v512 = vpop.f32.mrb[0].mxu0
    %v513 = vadd.f32 %v425, %v512
    %v514 = vpop.f32.mrb[0].mxu0
    %515 = vdwg.mxu0
    %v516 = vmax.f32 %v510, 0.0
    %v517 = vmax.f32 %v513, 0.0
    %v518 = vpack.c.bf16 %v517, %v516
    %v519 = vld [vmem:[#allocation14] sm:$0xf]
    %v520 = vld [vmem:[#allocation14 + $0x4] sm:$0xf]
    %v521 = vld [vmem:[#allocation14 + $0x8] sm:$0xf]
    %v522 = vld [vmem:[#allocation14 + $0xc] sm:$0xf]
    %v523 = vld [vmem:[#allocation14 + $0x10] sm:$0xf]
    %v524 = vld [vmem:[#allocation14 + $0x14] sm:$0xf]
    %v525 = vld [vmem:[#allocation14 + $0x18] sm:$0xf]
    %v526 = vld [vmem:[#allocation14 + $0x1c] sm:$0xf]
    %v527 = vld [vmem:[#allocation14 + $0x20] sm:$0xf]
    %v528 = vld [vmem:[#allocation14 + $0x24] sm:$0xf]
    %v529 = vld [vmem:[#allocation14 + $0x28] sm:$0xf]
    %v530 = vld [vmem:[#allocation14 + $0x2c] sm:$0xf]
    %v531 = vld [vmem:[#allocation14 + $0x30] sm:$0xf]
    %v532 = vld [vmem:[#allocation14 + $0x34] sm:$0xf]
    %v533 = vld [vmem:[#allocation14 + $0x38] sm:$0xf]
    %v534 = vld [vmem:[#allocation14 + $0x3c] sm:$0xf]
    %v535 = vld [vmem:[#allocation16] sm:$0x1]
    %v537 = vlaneseq
    %v538 = vshrl.u32 %v537, 7
    %v539 = vsub.s32 0, %v538
    %v540 = vrot.slane %v535, %v539
    %v558 = vunpack.c.l.b16 %v519
    %v559 = vunpack.c.l.b16 %v520
    %v560 = vunpack.c.l.b16 %v521
    %v561 = vunpack.c.l.b16 %v522
    %v562 = vunpack.c.l.b16 %v523
    %v563 = vunpack.c.l.b16 %v524
    %v564 = vunpack.c.l.b16 %v525
    %v565 = vunpack.c.l.b16 %v526
    %v566 = vunpack.c.l.b16 %v527
    %v567 = vunpack.c.l.b16 %v528
    %v568 = vunpack.c.l.b16 %v529
    %v569 = vunpack.c.l.b16 %v530
    %v570 = vunpack.c.l.b16 %v531
    %v571 = vunpack.c.l.b16 %v532
    %v572 = vunpack.c.l.b16 %v533
    %v573 = vunpack.c.l.b16 %v534
    %v574 = vpack.c.b16 %v559, %v558
    %v575 = vpack.c.b16 %v561, %v560
    %v576 = vpack.c.b16 %v563, %v562
    %v577 = vpack.c.b16 %v565, %v564
    %v578 = vpack.c.b16 %v567, %v566
    %v579 = vpack.c.b16 %v569, %v568
    %v580 = vpack.c.b16 %v571, %v570
    %v581 = vpack.c.b16 %v573, %v572
    %590 = vmatprep.subr.bf16.mxu0 0
    %591 = vmatpush1.bf16.msra.mxu0 %v574
    %592 = vmatprep.subr.bf16.mxu0 0
    %593 = vmatpush1.bf16.msra.mxu0 %v575
    %594 = vmatprep.subr.bf16.mxu0 0
    %595 = vmatpush1.bf16.msra.mxu0 %v576
    %596 = vmatprep.subr.bf16.mxu0 0
    %597 = vmatpush1.bf16.msra.mxu0 %v577
    %598 = vmatprep.subr.bf16.mxu0 0
    %599 = vmatpush1.bf16.msra.mxu0 %v578
    %600 = vmatprep.subr.bf16.mxu0 0
    %601 = vmatpush1.bf16.msra.mxu0 %v579
    %602 = vmatprep.subr.bf16.mxu0 0
    %603 = vmatpush1.bf16.msra.mxu0 %v580
    %604 = vmatprep.subr.bf16.mxu0 0
    %605 = vmatpush1.bf16.msra.mxu0 %v581
    %606 = vmatprep.subr.bf16.mxu0 0
    %607 = vmatpush1.bf16.msra.mxu0 0
    %608 = vmatprep.subr.bf16.mxu0 0
    %609 = vmatpush1.bf16.msra.mxu0 0
    %610 = vmatprep.subr.bf16.mxu0 0
    %611 = vmatpush1.bf16.msra.mxu0 0
    %612 = vmatprep.subr.bf16.mxu0 0
    %613 = vmatpush1.bf16.msra.mxu0 0
    %614 = vmatprep.subr.bf16.mxu0 0
    %615 = vmatpush1.bf16.msra.mxu0 0
    %616 = vmatprep.subr.bf16.mxu0 0
    %617 = vmatpush1.bf16.msra.mxu0 0
    %618 = vmatprep.subr.bf16.mxu0 0
    %619 = vmatpush1.bf16.msra.mxu0 0
    %620 = vmatprep.subr.bf16.mxu0 0
    %621 = vmatpush1.bf16.msra.mxu0 0
    %622 = vmatprep.mubr.bf16.mxu0 0
    %623 = vmatmul.mubr.bf16.gmra.mrb[0].mxu0 %v518
    %v624 = vpop.f32.mrb[0].mxu0
    %v625 = vadd.f32 %v540, %v624
    %v626 = vpop.f32.mrb[0].mxu0
    %v627 = vpop.f32.mrb[0].mxu0
    %v628 = vadd.f32 %v540, %v627
    %v629 = vpop.f32.mrb[0].mxu0
    %630 = vdwg.mxu0
    %v631 = vpack.c.bf16 %v628, %v625
    %v632 = vld [vmem:[#allocation17] sm:$0xf]
    %v633 = vld [vmem:[#allocation17 + $0x4] sm:$0xf]
    %v634 = vld [vmem:[#allocation17 + $0x8] sm:$0xf]
    %v635 = vld [vmem:[#allocation17 + $0xc] sm:$0xf]
    %v636 = vld [vmem:[#allocation17 + $0x10] sm:$0xf]
    %v637 = vld [vmem:[#allocation17 + $0x14] sm:$0xf]
    %v638 = vld [vmem:[#allocation17 + $0x18] sm:$0xf]
    %v639 = vld [vmem:[#allocation17 + $0x1c] sm:$0xf]
    %v640 = vld [vmem:[#allocation17 + $0x20] sm:$0xf]
    %v641 = vld [vmem:[#allocation17 + $0x24] sm:$0xf]
    %v642 = vld [vmem:[#allocation17 + $0x28] sm:$0xf]
    %v643 = vld [vmem:[#allocation17 + $0x2c] sm:$0xf]
    %v644 = vld [vmem:[#allocation17 + $0x30] sm:$0xf]
    %v645 = vld [vmem:[#allocation17 + $0x34] sm:$0xf]
    %v646 = vld [vmem:[#allocation17 + $0x38] sm:$0xf]
    %v647 = vld [vmem:[#allocation17 + $0x3c] sm:$0xf]
    %v664 = vunpack.c.l.b16 %v632
    %v665 = vunpack.c.l.b16 %v633
    %v666 = vunpack.c.l.b16 %v634
    %v667 = vunpack.c.l.b16 %v635
    %v668 = vunpack.c.l.b16 %v636
    %v669 = vunpack.c.l.b16 %v637
    %v670 = vunpack.c.l.b16 %v638
    %v671 = vunpack.c.l.b16 %v639
    %v672 = vunpack.c.l.b16 %v640
    %v673 = vunpack.c.l.b16 %v641
    %v674 = vunpack.c.l.b16 %v642
    %v675 = vunpack.c.l.b16 %v643
    %v676 = vunpack.c.l.b16 %v644
    %v677 = vunpack.c.l.b16 %v645
    %v678 = vunpack.c.l.b16 %v646
    %v679 = vunpack.c.l.b16 %v647
    %v680 = vpack.c.b16 %v665, %v664
    %v681 = vpack.c.b16 %v667, %v666
    %v682 = vpack.c.b16 %v669, %v668
    %v683 = vpack.c.b16 %v671, %v670
    %v684 = vpack.c.b16 %v673, %v672
    %v685 = vpack.c.b16 %v675, %v674
    %v686 = vpack.c.b16 %v677, %v676
    %v687 = vpack.c.b16 %v679, %v678
    %696 = vmatprep.subr.bf16.mxu0 0
    %697 = vmatpush1.bf16.msra.mxu0 %v680
    %698 = vmatprep.subr.bf16.mxu0 0
    %699 = vmatpush1.bf16.msra.mxu0 %v681
    %700 = vmatprep.subr.bf16.mxu0 0
    %701 = vmatpush1.bf16.msra.mxu0 %v682
    %702 = vmatprep.subr.bf16.mxu0 0
    %703 = vmatpush1.bf16.msra.mxu0 %v683
    %704 = vmatprep.subr.bf16.mxu0 0
    %705 = vmatpush1.bf16.msra.mxu0 %v684
    %706 = vmatprep.subr.bf16.mxu0 0
    %707 = vmatpush1.bf16.msra.mxu0 %v685
    %708 = vmatprep.subr.bf16.mxu0 0
    %709 = vmatpush1.bf16.msra.mxu0 %v686
    %710 = vmatprep.subr.bf16.mxu0 0
    %711 = vmatpush1.bf16.msra.mxu0 %v687
    %712 = vmatprep.subr.bf16.mxu0 0
    %713 = vmatpush1.bf16.msra.mxu0 0
    %714 = vmatprep.subr.bf16.mxu0 0
    %715 = vmatpush1.bf16.msra.mxu0 0
    %716 = vmatprep.subr.bf16.mxu0 0
    %717 = vmatpush1.bf16.msra.mxu0 0
    %718 = vmatprep.subr.bf16.mxu0 0
    %719 = vmatpush1.bf16.msra.mxu0 0
    %720 = vmatprep.subr.bf16.mxu0 0
    %721 = vmatpush1.bf16.msra.mxu0 0
    %722 = vmatprep.subr.bf16.mxu0 0
    %723 = vmatpush1.bf16.msra.mxu0 0
    %724 = vmatprep.subr.bf16.mxu0 0
    %725 = vmatpush1.bf16.msra.mxu0 0
    %726 = vmatprep.subr.bf16.mxu0 0
    %727 = vmatpush1.bf16.msra.mxu0 0
    %728 = vmatprep.mubr.bf16.mxu0 0
    %729 = vmatmul.mubr.bf16.gmra.mrb[0].mxu0 %v631
    %v730 = vpop.f32.mrb[0].mxu0
    %v731 = vadd.f32 0.0, %v730
    %v732 = vpop.f32.mrb[0].mxu0
    %v733 = vpop.f32.mrb[0].mxu0
    %v734 = vadd.f32 0.0, %v733
    %v735 = vpop.f32.mrb[0].mxu0
    %736 = vdwg.mxu0
    %v738 = vunpack.c.l.b16 %v631
    %v739 = vunpack.c.h.b16 %v631
    %v740 = vpack.c.b16 %v738, %v738
    %v741 = vpack.c.b16 %v739, %v739
    %744 = vst [vmem:[#allocation19] sm:$0xf] %v740
    %745 = vst [vmem:[#allocation19 + $0x4] sm:$0xf] %v741
    %v746 = vpack.c.bf16 %v734, %v731
    %v748 = vunpack.c.l.b16 %v746
    %v749 = vunpack.c.h.b16 %v746
    %v750 = vpack.c.b16 %v748, %v748
    %v751 = vpack.c.b16 %v749, %v749
    %754 = vst [vmem:[#allocation20] sm:$0xf] %v750
    %755 = vst [vmem:[#allocation20 + $0x4] sm:$0xf] %v751
    // Predicated region
    $region82: #{tpu_custom_call.1} parent=1 // pred_check
      _
    $region83: #{tpu_custom_call.1} parent=1 // pred_check_branch
      %757 = sbr.rel (0) target = $region85
    $region84: #{tpu_custom_call.1} parent=1 // pred_region
      %s759 = ssub.s32 128, 128
      %760 = vsyncadd [#allocation4], %s759
      %s761 = sshll.u32 [#allocation19], 4
      %s762 = int_to_ptr.vmem [resolvable:$true] %s761
      %767 = dma.vmem_to_hbm [thread:$0]  %s762, 128, %s10, [#allocation4], 64, 64, 4
    $region85: #{tpu_custom_call.1} parent=1 // pred_fallthru
      _
    // Predicated region
    $region86: #{tpu_custom_call.1} parent=1 // pred_check
      _
    $region87: #{tpu_custom_call.1} parent=1 // pred_check_branch
      %769 = sbr.rel (0) target = $region89
    $region88: #{tpu_custom_call.1} parent=1 // pred_region
      %s771 = ssub.s32 128, 128
      %772 = vsyncadd [#allocation21], %s771
      %s773 = sshll.u32 [#allocation20], 4
      %s774 = int_to_ptr.vmem [resolvable:$true] %s773
      %779 = dma.vmem_to_hbm [thread:$0]  %s774, 128, %s11, [#allocation21], 64, 64, 4
    $region89: #{tpu_custom_call.1} parent=1 // pred_fallthru
      _
    // Predicated region
    $region90: #{tpu_custom_call.1} parent=1 // pred_check
      _
    $region91: #{tpu_custom_call.1} parent=1 // pred_check_branch
      %781 = sbr.rel (0) target = $region93
    $region92: #{tpu_custom_call.1} parent=1 // pred_region
      %782 = dma.done [#allocation4], 128
    $region93: #{tpu_custom_call.1} parent=1 // pred_fallthru
      _
    // Predicated region
    $region94: #{tpu_custom_call.1} parent=1 // pred_check
      _
    $region95: #{tpu_custom_call.1} parent=1 // pred_check_branch
      %784 = sbr.rel (0) target = $region97
    $region96: #{tpu_custom_call.1} parent=1 // pred_region
      %785 = dma.done [#allocation21], 128
    $region97: #{tpu_custom_call.1} parent=1 // pred_fallthru
      _
    %786 = vsyncpa [#allocation3], 1
    %787 = vsyncpa [#allocation6], 1
    %788 = vsyncpa [#allocation9], 1
    %789 = vsyncpa [#allocation12], 1
    %790 = vsyncpa [#allocation15], 1
    %791 = vsyncpa [#allocation18], 1
    %792 = vsyncpa [#allocation4], 1
    %793 = vsyncpa [#allocation21], 1

</llo_original>
